<compile_context>
chip_gen: v7x
topology: tpu7x:2x2x1
jax: 0.10.0
libtpu: 0.0.40
codegen_flags: <defaults>
</compile_context>

<pallas_src>
import functools

import jax
import jax.numpy as jnp
from jax.experimental import pallas as pl
from jax.experimental.pallas import tpu as pltpu

EPS = 1e-5          # torch nn.LayerNorm default
NEG_BIG = -1e30     # finite "-inf" so empty tiles/partitions never produce NaNs


def _probe_buffered():
    """Single-buffer support for constant-index weight blocks (halves weight VMEM)."""
    if not hasattr(pl, "Buffered"):
        return False
    try:
        pl.BlockSpec((8, 128), lambda i: (0, 0), pipeline_mode=pl.Buffered(1))
        return True
    except Exception:
        return False


_HAS_BUFFERED = _probe_buffered()


def _device_vmem_bytes():
    try:
        info = pltpu.get_tpu_info()
        cap = getattr(info, "vmem_capacity_bytes", None)
        if cap:
            return int(cap)
    except Exception:
        pass
    return 64 << 20   # conservative: v7x per-TensorCore VMEM


def _layernorm(y, gamma, beta):
    # Single-pass LN: one reduction pass producing mean and E[x^2]; var = E[x^2] - mu^2.
    mu = jnp.mean(y, axis=-1, keepdims=True)
    ms = jnp.mean(y * y, axis=-1, keepdims=True)
    var = ms - mu * mu
    return (y - mu) * jax.lax.rsqrt(var + EPS) * gamma + beta


def _gelu_tanh(x):
    c = 0.7978845608028654  # sqrt(2/pi)
    return 0.5 * x * (1.0 + jnp.tanh(c * (x + 0.044715 * x * x * x)))


def abmil_kernel(x_ref,
                 w1_ref, v1_ref, w2_ref, v2_ref, w3_ref, v3_ref,
                 wab_ref, avec_ref,
                 o_acc_ref, o_stats_ref,
                 m_sc, l_sc, acc_sc,
                 *, n_heads, hidden_dim, attn_dim, n_tokens, token_block, steps, need_mask):
    p_idx = pl.program_id(1)           # token partition
    t = pl.program_id(2)               # token tile within partition (reduction axis)
    n_t = pl.num_programs(2)
    H, Da = hidden_dim, attn_dim

    @pl.when(t == 0)
    def _init():
        m_sc[...] = jnp.full(m_sc.shape, NEG_BIG, m_sc.dtype)
        l_sc[...] = jnp.zeros(l_sc.shape, l_sc.dtype)
        acc_sc[...] = jnp.zeros(acc_sc.shape, acc_sc.dtype)

    def linear_ln_gelu(h_bf16, w_ref, v_ref):
        v = v_ref[...]                                     # (3, D) f32: [bias, gamma, beta]
        y = jnp.dot(h_bf16, w_ref[...], preferred_element_type=jnp.float32) + v[0:1, :]
        return _gelu_tanh(_layernorm(y, v[1:2, :], v[2:3, :]))

    # Pre-attention MLP (bf16 MXU matmuls, f32 LN/GELU). Only the bf16 copy of the final
    # embedding stays live across the head loop.
    h = linear_ln_gelu(x_ref[...], w1_ref, v1_ref).astype(jnp.bfloat16)     # (TT, H)
    h = linear_ln_gelu(h, w2_ref, v2_ref).astype(jnp.bfloat16)              # (TT, H)
    e = linear_ln_gelu(h, w3_ref, v3_ref).astype(jnp.bfloat16)              # (TT, nh*H) head-major

    # Gated ABMIL attention: per head one fused (TT,H)@(H,2*Da) matmul, split tanh/sigmoid.
    scores = []
    for hd in range(n_heads):
        e_h = e[:, hd * H:(hd + 1) * H]                    # (TT, H) bf16
        av = avec_ref[hd]                                  # (2, 2*Da) f32: [ba|bb], [wc|0]
        y = jnp.dot(e_h, wab_ref[hd], preferred_element_type=jnp.float32) + av[0:1, :]
        a = jnp.tanh(y[:, :Da])
        g = 0.5 * (1.0 + jnp.tanh(0.5 * y[:, Da:]))        # sigmoid via EUP tanh (no divide)
        # attention_c bias is a per-head constant over tokens -> cancels in the softmax.
        scores.append(jnp.sum(a * g * av[1:2, :Da], axis=-1, keepdims=True))   # (TT, 1)
    s = scores[0] if n_heads == 1 else jnp.concatenate(scores, axis=1)         # (TT, nh)

    if need_mask:
        row = jax.lax.broadcasted_iota(jnp.int32, (token_block, 1), 0)
        global_tok = (p_idx * steps + t) * token_block + row
        s = jnp.where(global_tok < n_tokens, s, -jnp.inf)

    # Online softmax state, vectorized across heads.
    m_old = m_sc[...]                                      # (1, nh)
    m_new = jnp.maximum(m_old, jnp.max(s, axis=0, keepdims=True))
    alpha = jnp.exp(m_old - m_new)                         # (1, nh)
    p = jnp.exp(s - m_new)                                 # (TT, nh)
    l_sc[...] = alpha * l_sc[...] + jnp.sum(p, axis=0, keepdims=True)
    m_sc[...] = m_new

    # Pooling accumulate (VPU multiply + sublane reduce). If a bundle dump ever shows the VPU
    # binding here (small H/Da), switch to p[:, hd].T @ e_h on the MXU instead.
    for hd in range(n_heads):
        e32 = e[:, hd * H:(hd + 1) * H].astype(jnp.float32)
        pooled = jnp.sum(e32 * p[:, hd:hd + 1], axis=0, keepdims=True)      # (1, H)
        acc_sc[hd:hd + 1, :] = alpha[:, hd:hd + 1] * acc_sc[hd:hd + 1, :] + pooled

    @pl.when(t == n_t - 1)
    def _finalize():
        o_acc_ref[...] = acc_sc[...]                        # (nh, H) full-block store
        o_stats_ref[0:1, :] = m_sc[...]
        o_stats_ref[1:2, :] = l_sc[...]


def _build_call(B, T, T_pad, Din, H, nh, Da, TT, P, steps):
    grid = (B, P, steps)
    kernel = functools.partial(
        abmil_kernel, n_heads=nh, hidden_dim=H, attn_dim=Da,
        n_tokens=T, token_block=TT, steps=steps, need_mask=(T_pad != T))

    def wspec(shape):
        zeros = (0,) * len(shape)
        if _HAS_BUFFERED:
            # Constant index_map -> fetched once; single-buffered to halve weight VMEM.
            return pl.BlockSpec(shape, lambda b, p, t: zeros, pipeline_mode=pl.Buffered(1))
        return pl.BlockSpec(shape, lambda b, p, t: zeros)

    in_specs = [
        pl.BlockSpec((None, TT, Din), lambda b, p, t: (b, p * steps + t, 0)),   # x (bf16)
        wspec((Din, H)),       wspec((3, H)),
        wspec((H, H)),         wspec((3, H)),
        wspec((H, nh * H)),    wspec((3, nh * H)),
        wspec((nh, H, 2 * Da)), wspec((nh, 2, 2 * Da)),
    ]
    out_specs = [
        pl.BlockSpec((None, None, nh, H), lambda b, p, t: (b, p, 0, 0)),   # partial acc
        pl.BlockSpec((None, None, 2, nh), lambda b, p, t: (b, p, 0, 0)),   # partial [m; l]
    ]
    out_shape = (jax.ShapeDtypeStruct((B, P, nh, H), jnp.float32),
                 jax.ShapeDtypeStruct((B, P, 2, nh), jnp.float32))
    scratch = [pltpu.VMEM((1, nh), jnp.float32),    # running max per head
               pltpu.VMEM((1, nh), jnp.float32),    # running softmax denominator per head
               pltpu.VMEM((nh, H), jnp.float32)]    # running weighted embedding sum per head

    # VMEM budget (all quantities already in bytes; device-aware cap).
    wbuf = 1 if _HAS_BUFFERED else 2
    weight_bytes = 2 * (Din * H + H * H + H * nh * H + nh * H * 2 * Da)      # bf16 matrices
    vec_bytes = 4 * (2 * 3 * H + 3 * nh * H + nh * 2 * 2 * Da)               # f32 vectors
    x_tile_bytes = 2 * TT * Din                                              # bf16 input tile
    out_tile_bytes = 4 * (nh * H + 2 * nh)
    scratch_bytes = 4 * (nh * H + 2 * nh)
    act_bytes = 4 * TT * (2 * H + 2 * nh * H + 4 * Da + 2 * nh) + 2 * TT * nh * H
    est = (wbuf * (weight_bytes + vec_bytes) + 2 * x_tile_bytes + 2 * out_tile_bytes
           + scratch_bytes + act_bytes)
    vmem_cap = _device_vmem_bytes()
    vmem_limit = int(min(max(est + (8 << 20), 32 << 20), int(0.85 * vmem_cap)))

    mlp_flops = 2 * B * T_pad * (Din * H + H * H + H * nh * H)
    attn_flops = 2 * B * T_pad * nh * (H * 2 * Da + Da + H)
    cost = pl.CostEstimate(
        flops=int(mlp_flops + attn_flops),
        transcendentals=int(B * T_pad * (2 * H + nh * H + nh * (2 * Da + 1))),
        bytes_accessed=int(2 * B * T_pad * Din + 4 * B * P * (nh * H + 2 * nh)
                           + weight_bytes + vec_bytes),
    )

    return pl.pallas_call(
        kernel,
        out_shape=out_shape,
        grid_spec=pltpu.PrefetchScalarGridSpec(
            num_scalar_prefetch=0,
            grid=grid,
            in_specs=in_specs,
            out_specs=out_specs,
            scratch_shapes=scratch,
        ),
        compiler_params=pltpu.CompilerParams(
            dimension_semantics=("parallel", "parallel", "arbitrary"),
            vmem_limit_bytes=vmem_limit,
        ),
        cost_estimate=cost,
    )


def abmil_forward(bags, params, *, token_block=512, token_partitions=None):
    """bags: (B, T, input_dim). Returns (B, hidden_dim, n_heads) slide embeddings.

    token_block: tokens per grid step (512 good on v6e / v7x with the bf16 input stream;
                 use 256 on v5e).
    token_partitions: number of parallel token partitions (flash-state partials combined in a
                 tiny epilogue). Defaults to 2 when B == 1 (keeps both v7x TensorCores busy),
                 else 1.
    """
    B, T, Din = bags.shape
    nh, H, Da2 = params["wab"].shape
    Da = Da2 // 2
    assert params["w1"].shape == (Din, H)
    assert token_block % 8 == 0 and token_block >= 8

    TT = min(token_block, max(8, ((T + 7) // 8) * 8))
    if token_partitions is None:
        token_partitions = 2 if (B == 1 and T > TT) else 1
    P = max(1, int(token_partitions))
    steps = max(1, -(-T // (P * TT)))
    T_pad = P * steps * TT

    x = bags.astype(jnp.bfloat16)                      # halve the dominant HBM input stream
    if T_pad != T:
        x = jnp.pad(x, ((0, 0), (0, T_pad - T), (0, 0)))

    acc, stats = _build_call(B, T, T_pad, Din, H, nh, Da, TT, P, steps)(
        x,
        params["w1"], params["v1"], params["w2"], params["v2"],
        params["w3"], params["v3"], params["wab"], params["avec"])

    # Combine the per-partition flash-softmax partials (tiny: B*P*nh*(H+2) elements).
    m = stats[:, :, 0, :]                              # (B, P, nh)
    l = stats[:, :, 1, :]                              # (B, P, nh)
    m_g = jnp.max(m, axis=1, keepdims=True)            # (B, 1, nh)
    w = jnp.exp(m - m_g)                               # (B, P, nh)
    l_g = jnp.sum(w * l, axis=1)                       # (B, nh)
    acc_g = jnp.sum(w[..., None] * acc, axis=1)        # (B, nh, H)
    out = acc_g / l_g[..., None]                       # (B, nh, H)
    return jnp.transpose(out, (0, 2, 1)).astype(bags.dtype)   # (B, H, nh) like the torch module


def init_params(key, input_dim, hidden_dim, n_heads, attn_hidden_dim):
    """Deterministic init mirroring nn.Linear (U(+-1/sqrt(fan_in))) and nn.LayerNorm (1, 0).
    Matmul weights stored in bf16 (head-major columns for the 3rd Linear). Per-layer
    bias/gamma/beta stacked into (3, D) blocks. Per-head attention weights Wa|Wb fused into one
    (H, 2*Da) matrix; [bias_a|bias_b] and [w_score|0] stacked into a (2, 2*Da) block.
    The attention_c bias is omitted (cancels under the token softmax)."""
    H, nh, Da = hidden_dim, n_heads, attn_hidden_dim
    keys = iter(jax.random.split(key, 2 * (3 + 3 * nh)))

    def linear(fan_in, fan_out):
        bound = 1.0 / (fan_in ** 0.5)
        w = jax.random.uniform(next(keys), (fan_in, fan_out), jnp.float32, -bound, bound)
        b = jax.random.uniform(next(keys), (fan_out,), jnp.float32, -bound, bound)
        return w, b

    def vec_block(b, dim):
        return jnp.stack([b, jnp.ones((dim,), jnp.float32), jnp.zeros((dim,), jnp.float32)])

    w1, b1 = linear(input_dim, H)
    w2, b2 = linear(H, H)
    w3, b3 = linear(H, H * nh)

    wab, avec = [], []
    for _ in range(nh):
        wa, ba = linear(H, Da)       # attention_a: Linear -> Tanh
        wg, bg = linear(H, Da)       # attention_b: Linear -> Sigmoid
        wc, _bc = linear(Da, 1)      # attention_c: Linear -> score (bias cancels in softmax)
        wab.append(jnp.concatenate([wa, wg], axis=1))                        # (H, 2*Da)
        avec.append(jnp.stack([jnp.concatenate([ba, bg]),
                               jnp.concatenate([wc[:, 0], jnp.zeros((Da,), jnp.float32)])]))

    bf = jnp.bfloat16
    return {
        "w1": w1.astype(bf), "v1": vec_block(b1, H),
        "w2": w2.astype(bf), "v2": vec_block(b2, H),
        "w3": w3.astype(bf), "v3": vec_block(b3, H * nh),
        "wab": jnp.stack(wab).astype(bf),     # (nh, H, 2*Da)
        "avec": jnp.stack(avec),              # (nh, 2, 2*Da) f32
    }


def abmil_reference(bags, params):
    """Pure-JAX reference (eval-mode dropout = identity), same bf16-matmul / f32-elementwise
    precision as the kernel (including the bf16 pre-attention embedding used for pooling)."""

    def mm(a_bf16, b_bf16):
        return jnp.dot(a_bf16, b_bf16, preferred_element_type=jnp.float32)

    def block(h_bf16, w, v):
        y = mm(h_bf16, w) + v[0]
        return _gelu_tanh(_layernorm(y, v[1], v[2]))

    x = bags.astype(jnp.bfloat16)
    h = block(x, params["w1"], params["v1"]).astype(jnp.bfloat16)
    h = block(h, params["w2"], params["v2"]).astype(jnp.bfloat16)
    e = block(h, params["w3"], params["v3"]).astype(jnp.bfloat16)       # (B, T, nh*H)

    nh, H, Da2 = params["wab"].shape
    Da = Da2 // 2
    outs = []
    for hd in range(nh):
        eh = e[:, :, hd * H:(hd + 1) * H]                               # (B, T, H) bf16
        y = mm(eh, params["wab"][hd]) + params["avec"][hd, 0]
        a = jnp.tanh(y[..., :Da])
        g = jax.nn.sigmoid(y[..., Da:])
        s = jnp.sum(a * g * params["avec"][hd, 1, :Da], axis=-1, keepdims=True)
        attn = jax.nn.softmax(s, axis=1)                                # softmax over tokens
        outs.append(jnp.sum(eh.astype(jnp.float32) * attn, axis=1))    # (B, H)
    return jnp.stack(outs, axis=-1).astype(bags.dtype)                  # (B, H, nh)


if __name__ == "__main__":
    key = jax.random.PRNGKey(0)
    k_x, k_p = jax.random.split(key)

    # Small shapes: 2 bags of 20 tokens, input_dim=32, hidden_dim=32, 2 heads, attn hidden 16.
    B, T, Din = 2, 20, 32
    H, NH, DA = 32, 2, 16

    bags = jax.random.normal(k_x, (B, T, Din), jnp.float32)
    params = init_params(k_p, Din, H, NH, DA)
    ref = abmil_reference(bags, params)

    # token_block=8 with 2 token partitions -> 2x2 token tiles per bag (padded tail) to exercise
    # the online-softmax accumulation, the padded-row masking, and the partition-combine epilogue.
    out = jax.block_until_ready(abmil_forward(bags, params, token_block=8, token_partitions=2))
    assert out.shape == (B, H, NH), out.shape
    assert jnp.allclose(out, ref, atol=5e-3, rtol=5e-3), float(jnp.max(jnp.abs(out - ref)))

    # Single-partition path (default for B > 1).
    out1 = jax.block_until_ready(abmil_forward(bags, params, token_block=8, token_partitions=1))
    assert jnp.allclose(out1, ref, atol=5e-3, rtol=5e-3), float(jnp.max(jnp.abs(out1 - ref)))

    print("KERNEL_OK")
</pallas_src>

<mosaic_0001>
module attributes {stable_mosaic.version = 11 : i64} {
  func.func @abmil_kernel(%arg0: i32, %arg1: i32, %arg2: i32, %arg3: memref<1x8x32xbf16, #tpu.memory_space<vmem>>, %arg4: memref<32x32xbf16, #tpu.memory_space<vmem>>, %arg5: memref<3x32xf32, #tpu.memory_space<vmem>>, %arg6: memref<32x32xbf16, #tpu.memory_space<vmem>>, %arg7: memref<3x32xf32, #tpu.memory_space<vmem>>, %arg8: memref<32x64xbf16, #tpu.memory_space<vmem>>, %arg9: memref<3x64xf32, #tpu.memory_space<vmem>>, %arg10: memref<2x32x32xbf16, #tpu.memory_space<vmem>>, %arg11: memref<2x2x32xf32, #tpu.memory_space<vmem>>, %arg12: memref<1x1x2x32xf32, #tpu.memory_space<vmem>>, %arg13: memref<1x1x2x2xf32, #tpu.memory_space<vmem>>, %arg14: memref<1x2xf32, #tpu.memory_space<vmem>>, %arg15: memref<1x2xf32, #tpu.memory_space<vmem>>, %arg16: memref<2x32xf32, #tpu.memory_space<vmem>>) attributes {dimension_semantics = [#tpu.dimension_semantics<parallel>, #tpu.dimension_semantics<parallel>, #tpu.dimension_semantics<arbitrary>], iteration_bounds = array<i64: 2, 2, 2>, scalar_prefetch = 0 : i64, scratch_operands = 3 : i64, tpu.core_type = #tpu.core_type<tc>, window_params = [{transform_indices = @transform_0, window_bounds = array<i64: 1, 8, 32>}, {pipeline_mode = #tpu.pipeline_mode<synchronous>, transform_indices = @transform_1, window_bounds = array<i64: 32, 32>}, {pipeline_mode = #tpu.pipeline_mode<synchronous>, transform_indices = @transform_2, window_bounds = array<i64: 3, 32>}, {pipeline_mode = #tpu.pipeline_mode<synchronous>, transform_indices = @transform_3, window_bounds = array<i64: 32, 32>}, {pipeline_mode = #tpu.pipeline_mode<synchronous>, transform_indices = @transform_4, window_bounds = array<i64: 3, 32>}, {pipeline_mode = #tpu.pipeline_mode<synchronous>, transform_indices = @transform_5, window_bounds = array<i64: 32, 64>}, {pipeline_mode = #tpu.pipeline_mode<synchronous>, transform_indices = @transform_6, window_bounds = array<i64: 3, 64>}, {pipeline_mode = #tpu.pipeline_mode<synchronous>, transform_indices = @transform_7, window_bounds = array<i64: 2, 32, 32>}, {pipeline_mode = #tpu.pipeline_mode<synchronous>, transform_indices = @transform_8, window_bounds = array<i64: 2, 2, 32>}, {transform_indices = @transform_9, window_bounds = array<i64: 1, 1, 2, 32>}, {transform_indices = @transform_10, window_bounds = array<i64: 1, 1, 2, 2>}]} {
    %c0_i32 = arith.constant 0 : i32
    %0 = arith.cmpi eq, %arg2, %c0_i32 : i32
    %1 = arith.extui %0 : i1 to i32
    %c0_i32_0 = arith.constant 0 : i32
    %2 = arith.cmpi ne, %1, %c0_i32_0 : i32
    scf.if %2 {
      %cst_87 = arith.constant -1.000000e+30 : f32
      %245 = vector.broadcast %cst_87 : f32 to vector<1x2xf32>
      %c0_88 = arith.constant 0 : index
      %c0_89 = arith.constant 0 : index
      %246 = vector.load %arg14[%c0_88, %c0_89] : memref<1x2xf32, #tpu.memory_space<vmem>>, vector<1x2xf32>
      tpu.vector_store %arg14[%c0_88, %c0_89], %245 {strides = array<i32>} : memref<1x2xf32, #tpu.memory_space<vmem>>, vector<1x2xf32>,
      %cst_90 = arith.constant 0.000000e+00 : f32
      %247 = vector.broadcast %cst_90 : f32 to vector<1x2xf32>
      %c0_91 = arith.constant 0 : index
      %c0_92 = arith.constant 0 : index
      %248 = vector.load %arg15[%c0_91, %c0_92] : memref<1x2xf32, #tpu.memory_space<vmem>>, vector<1x2xf32>
      tpu.vector_store %arg15[%c0_91, %c0_92], %247 {strides = array<i32>} : memref<1x2xf32, #tpu.memory_space<vmem>>, vector<1x2xf32>,
      %cst_93 = arith.constant 0.000000e+00 : f32
      %249 = vector.broadcast %cst_93 : f32 to vector<2x32xf32>
      %c0_94 = arith.constant 0 : index
      %c0_95 = arith.constant 0 : index
      %250 = vector.load %arg16[%c0_94, %c0_95] : memref<2x32xf32, #tpu.memory_space<vmem>>, vector<2x32xf32>
      tpu.vector_store %arg16[%c0_94, %c0_95], %249 {strides = array<i32>} : memref<2x32xf32, #tpu.memory_space<vmem>>, vector<2x32xf32>,
    } else {
    }
    %c0 = arith.constant 0 : index
    %c0_1 = arith.constant 0 : index
    %c0_2 = arith.constant 0 : index
    %3 = vector.load %arg3[%c0, %c0_1, %c0_2] : memref<1x8x32xbf16, #tpu.memory_space<vmem>>, vector<1x8x32xbf16>
    %4 = vector.shape_cast %3 : vector<1x8x32xbf16> to vector<8x32xbf16>
    %c0_3 = arith.constant 0 : index
    %c0_4 = arith.constant 0 : index
    %5 = vector.load %arg5[%c0_3, %c0_4] : memref<3x32xf32, #tpu.memory_space<vmem>>, vector<3x32xf32>
    %c0_5 = arith.constant 0 : index
    %c0_6 = arith.constant 0 : index
    %6 = vector.load %arg4[%c0_5, %c0_6] : memref<32x32xbf16, #tpu.memory_space<vmem>>, vector<32x32xbf16>
    %cst = arith.constant dense<0.000000e+00> : vector<8x32xf32>
    %7 = tpu.matmul %4, %6, %cst {dimension_numbers = #tpu.dot_dimension_numbers<[1], [0], [0], [1], [0, 0, 1, 1], [], []>} : vector<8x32xbf16>, vector<32x32xbf16>, vector<8x32xf32> -> vector<8x32xf32>
    %8 = vector.extract_strided_slice %5 {offsets = [0, 0], sizes = [1, 32], strides = [1, 1]} : vector<3x32xf32> to vector<1x32xf32>
    %9 = vector.broadcast %8 : vector<1x32xf32> to vector<8x32xf32>
    %10 = arith.addf %7, %9 : vector<8x32xf32>
    %11 = vector.extract_strided_slice %5 {offsets = [1, 0], sizes = [1, 32], strides = [1, 1]} : vector<3x32xf32> to vector<1x32xf32>
    %12 = vector.extract_strided_slice %5 {offsets = [2, 0], sizes = [1, 32], strides = [1, 1]} : vector<3x32xf32> to vector<1x32xf32>
    %cst_7 = arith.constant dense<0.000000e+00> : vector<8xf32>
    %13 = vector.multi_reduction <add>, %10, %cst_7 [1] : vector<8x32xf32> to vector<8xf32>
    %14 = vector.shape_cast %13 : vector<8xf32> to vector<8x1xf32>
    %cst_8 = arith.constant 3.200000e+01 : f32
    %15 = vector.broadcast %cst_8 : f32 to vector<8x1xf32>
    %16 = arith.divf %14, %15 : vector<8x1xf32>
    %17 = arith.mulf %10, %10 : vector<8x32xf32>
    %cst_9 = arith.constant dense<0.000000e+00> : vector<8xf32>
    %18 = vector.multi_reduction <add>, %17, %cst_9 [1] : vector<8x32xf32> to vector<8xf32>
    %19 = vector.shape_cast %18 : vector<8xf32> to vector<8x1xf32>
    %cst_10 = arith.constant 3.200000e+01 : f32
    %20 = vector.broadcast %cst_10 : f32 to vector<8x1xf32>
    %21 = arith.divf %19, %20 : vector<8x1xf32>
    %22 = arith.mulf %16, %16 : vector<8x1xf32>
    %23 = arith.subf %21, %22 : vector<8x1xf32>
    %24 = vector.broadcast %16 : vector<8x1xf32> to vector<8x32xf32>
    %25 = arith.subf %10, %24 : vector<8x32xf32>
    %cst_11 = arith.constant 9.99999974E-6 : f32
    %26 = vector.broadcast %cst_11 : f32 to vector<8x1xf32>
    %27 = arith.addf %23, %26 : vector<8x1xf32>
    %28 = math.rsqrt %27 : vector<8x1xf32>
    %29 = vector.broadcast %28 : vector<8x1xf32> to vector<8x32xf32>
    %30 = arith.mulf %25, %29 : vector<8x32xf32>
    %31 = vector.broadcast %11 : vector<1x32xf32> to vector<8x32xf32>
    %32 = arith.mulf %30, %31 : vector<8x32xf32>
    %33 = vector.broadcast %12 : vector<1x32xf32> to vector<8x32xf32>
    %34 = arith.addf %32, %33 : vector<8x32xf32>
    %cst_12 = arith.constant 5.000000e-01 : f32
    %35 = vector.broadcast %cst_12 : f32 to vector<8x32xf32>
    %36 = arith.mulf %35, %34 : vector<8x32xf32>
    %cst_13 = arith.constant 4.471500e-02 : f32
    %37 = vector.broadcast %cst_13 : f32 to vector<8x32xf32>
    %38 = arith.mulf %37, %34 : vector<8x32xf32>
    %39 = arith.mulf %38, %34 : vector<8x32xf32>
    %40 = arith.mulf %39, %34 : vector<8x32xf32>
    %41 = arith.addf %34, %40 : vector<8x32xf32>
    %cst_14 = arith.constant 0.797884583 : f32
    %42 = vector.broadcast %cst_14 : f32 to vector<8x32xf32>
    %43 = arith.mulf %42, %41 : vector<8x32xf32>
    %44 = math.tanh %43 : vector<8x32xf32>
    %cst_15 = arith.constant 1.000000e+00 : f32
    %45 = vector.broadcast %cst_15 : f32 to vector<8x32xf32>
    %46 = arith.addf %45, %44 : vector<8x32xf32>
    %47 = arith.mulf %36, %46 : vector<8x32xf32>
    %48 = arith.truncf %47 : vector<8x32xf32> to vector<8x32xbf16>
    %c0_16 = arith.constant 0 : index
    %c0_17 = arith.constant 0 : index
    %49 = vector.load %arg7[%c0_16, %c0_17] : memref<3x32xf32, #tpu.memory_space<vmem>>, vector<3x32xf32>
    %c0_18 = arith.constant 0 : index
    %c0_19 = arith.constant 0 : index
    %50 = vector.load %arg6[%c0_18, %c0_19] : memref<32x32xbf16, #tpu.memory_space<vmem>>, vector<32x32xbf16>
    %cst_20 = arith.constant dense<0.000000e+00> : vector<8x32xf32>
    %51 = tpu.matmul %48, %50, %cst_20 {dimension_numbers = #tpu.dot_dimension_numbers<[1], [0], [0], [1], [0, 0, 1, 1], [], []>} : vector<8x32xbf16>, vector<32x32xbf16>, vector<8x32xf32> -> vector<8x32xf32>
    %52 = vector.extract_strided_slice %49 {offsets = [0, 0], sizes = [1, 32], strides = [1, 1]} : vector<3x32xf32> to vector<1x32xf32>
    %53 = vector.broadcast %52 : vector<1x32xf32> to vector<8x32xf32>
    %54 = arith.addf %51, %53 : vector<8x32xf32>
    %55 = vector.extract_strided_slice %49 {offsets = [1, 0], sizes = [1, 32], strides = [1, 1]} : vector<3x32xf32> to vector<1x32xf32>
    %56 = vector.extract_strided_slice %49 {offsets = [2, 0], sizes = [1, 32], strides = [1, 1]} : vector<3x32xf32> to vector<1x32xf32>
    %cst_21 = arith.constant dense<0.000000e+00> : vector<8xf32>
    %57 = vector.multi_reduction <add>, %54, %cst_21 [1] : vector<8x32xf32> to vector<8xf32>
    %58 = vector.shape_cast %57 : vector<8xf32> to vector<8x1xf32>
    %cst_22 = arith.constant 3.200000e+01 : f32
    %59 = vector.broadcast %cst_22 : f32 to vector<8x1xf32>
    %60 = arith.divf %58, %59 : vector<8x1xf32>
    %61 = arith.mulf %54, %54 : vector<8x32xf32>
    %cst_23 = arith.constant dense<0.000000e+00> : vector<8xf32>
    %62 = vector.multi_reduction <add>, %61, %cst_23 [1] : vector<8x32xf32> to vector<8xf32>
    %63 = vector.shape_cast %62 : vector<8xf32> to vector<8x1xf32>
    %cst_24 = arith.constant 3.200000e+01 : f32
    %64 = vector.broadcast %cst_24 : f32 to vector<8x1xf32>
    %65 = arith.divf %63, %64 : vector<8x1xf32>
    %66 = arith.mulf %60, %60 : vector<8x1xf32>
    %67 = arith.subf %65, %66 : vector<8x1xf32>
    %68 = vector.broadcast %60 : vector<8x1xf32> to vector<8x32xf32>
    %69 = arith.subf %54, %68 : vector<8x32xf32>
    %cst_25 = arith.constant 9.99999974E-6 : f32
    %70 = vector.broadcast %cst_25 : f32 to vector<8x1xf32>
    %71 = arith.addf %67, %70 : vector<8x1xf32>
    %72 = math.rsqrt %71 : vector<8x1xf32>
    %73 = vector.broadcast %72 : vector<8x1xf32> to vector<8x32xf32>
    %74 = arith.mulf %69, %73 : vector<8x32xf32>
    %75 = vector.broadcast %55 : vector<1x32xf32> to vector<8x32xf32>
    %76 = arith.mulf %74, %75 : vector<8x32xf32>
    %77 = vector.broadcast %56 : vector<1x32xf32> to vector<8x32xf32>
    %78 = arith.addf %76, %77 : vector<8x32xf32>
    %cst_26 = arith.constant 5.000000e-01 : f32
    %79 = vector.broadcast %cst_26 : f32 to vector<8x32xf32>
    %80 = arith.mulf %79, %78 : vector<8x32xf32>
    %cst_27 = arith.constant 4.471500e-02 : f32
    %81 = vector.broadcast %cst_27 : f32 to vector<8x32xf32>
    %82 = arith.mulf %81, %78 : vector<8x32xf32>
    %83 = arith.mulf %82, %78 : vector<8x32xf32>
    %84 = arith.mulf %83, %78 : vector<8x32xf32>
    %85 = arith.addf %78, %84 : vector<8x32xf32>
    %cst_28 = arith.constant 0.797884583 : f32
    %86 = vector.broadcast %cst_28 : f32 to vector<8x32xf32>
    %87 = arith.mulf %86, %85 : vector<8x32xf32>
    %88 = math.tanh %87 : vector<8x32xf32>
    %cst_29 = arith.constant 1.000000e+00 : f32
    %89 = vector.broadcast %cst_29 : f32 to vector<8x32xf32>
    %90 = arith.addf %89, %88 : vector<8x32xf32>
    %91 = arith.mulf %80, %90 : vector<8x32xf32>
    %92 = arith.truncf %91 : vector<8x32xf32> to vector<8x32xbf16>
    %c0_30 = arith.constant 0 : index
    %c0_31 = arith.constant 0 : index
    %93 = vector.load %arg9[%c0_30, %c0_31] : memref<3x64xf32, #tpu.memory_space<vmem>>, vector<3x64xf32>
    %c0_32 = arith.constant 0 : index
    %c0_33 = arith.constant 0 : index
    %94 = vector.load %arg8[%c0_32, %c0_33] : memref<32x64xbf16, #tpu.memory_space<vmem>>, vector<32x64xbf16>
    %cst_34 = arith.constant dense<0.000000e+00> : vector<8x64xf32>
    %95 = tpu.matmul %92, %94, %cst_34 {dimension_numbers = #tpu.dot_dimension_numbers<[1], [0], [0], [1], [0, 0, 1, 1], [], []>} : vector<8x32xbf16>, vector<32x64xbf16>, vector<8x64xf32> -> vector<8x64xf32>
    %96 = vector.extract_strided_slice %93 {offsets = [0, 0], sizes = [1, 64], strides = [1, 1]} : vector<3x64xf32> to vector<1x64xf32>
    %97 = vector.broadcast %96 : vector<1x64xf32> to vector<8x64xf32>
    %98 = arith.addf %95, %97 : vector<8x64xf32>
    %99 = vector.extract_strided_slice %93 {offsets = [1, 0], sizes = [1, 64], strides = [1, 1]} : vector<3x64xf32> to vector<1x64xf32>
    %100 = vector.extract_strided_slice %93 {offsets = [2, 0], sizes = [1, 64], strides = [1, 1]} : vector<3x64xf32> to vector<1x64xf32>
    %cst_35 = arith.constant dense<0.000000e+00> : vector<8xf32>
    %101 = vector.multi_reduction <add>, %98, %cst_35 [1] : vector<8x64xf32> to vector<8xf32>
    %102 = vector.shape_cast %101 : vector<8xf32> to vector<8x1xf32>
    %cst_36 = arith.constant 6.400000e+01 : f32
    %103 = vector.broadcast %cst_36 : f32 to vector<8x1xf32>
    %104 = arith.divf %102, %103 : vector<8x1xf32>
    %105 = arith.mulf %98, %98 : vector<8x64xf32>
    %cst_37 = arith.constant dense<0.000000e+00> : vector<8xf32>
    %106 = vector.multi_reduction <add>, %105, %cst_37 [1] : vector<8x64xf32> to vector<8xf32>
    %107 = vector.shape_cast %106 : vector<8xf32> to vector<8x1xf32>
    %cst_38 = arith.constant 6.400000e+01 : f32
    %108 = vector.broadcast %cst_38 : f32 to vector<8x1xf32>
    %109 = arith.divf %107, %108 : vector<8x1xf32>
    %110 = arith.mulf %104, %104 : vector<8x1xf32>
    %111 = arith.subf %109, %110 : vector<8x1xf32>
    %112 = vector.broadcast %104 : vector<8x1xf32> to vector<8x64xf32>
    %113 = arith.subf %98, %112 : vector<8x64xf32>
    %cst_39 = arith.constant 9.99999974E-6 : f32
    %114 = vector.broadcast %cst_39 : f32 to vector<8x1xf32>
    %115 = arith.addf %111, %114 : vector<8x1xf32>
    %116 = math.rsqrt %115 : vector<8x1xf32>
    %117 = vector.broadcast %116 : vector<8x1xf32> to vector<8x64xf32>
    %118 = arith.mulf %113, %117 : vector<8x64xf32>
    %119 = vector.broadcast %99 : vector<1x64xf32> to vector<8x64xf32>
    %120 = arith.mulf %118, %119 : vector<8x64xf32>
    %121 = vector.broadcast %100 : vector<1x64xf32> to vector<8x64xf32>
    %122 = arith.addf %120, %121 : vector<8x64xf32>
    %cst_40 = arith.constant 5.000000e-01 : f32
    %123 = vector.broadcast %cst_40 : f32 to vector<8x64xf32>
    %124 = arith.mulf %123, %122 : vector<8x64xf32>
    %cst_41 = arith.constant 4.471500e-02 : f32
    %125 = vector.broadcast %cst_41 : f32 to vector<8x64xf32>
    %126 = arith.mulf %125, %122 : vector<8x64xf32>
    %127 = arith.mulf %126, %122 : vector<8x64xf32>
    %128 = arith.mulf %127, %122 : vector<8x64xf32>
    %129 = arith.addf %122, %128 : vector<8x64xf32>
    %cst_42 = arith.constant 0.797884583 : f32
    %130 = vector.broadcast %cst_42 : f32 to vector<8x64xf32>
    %131 = arith.mulf %130, %129 : vector<8x64xf32>
    %132 = math.tanh %131 : vector<8x64xf32>
    %cst_43 = arith.constant 1.000000e+00 : f32
    %133 = vector.broadcast %cst_43 : f32 to vector<8x64xf32>
    %134 = arith.addf %133, %132 : vector<8x64xf32>
    %135 = arith.mulf %124, %134 : vector<8x64xf32>
    %136 = arith.truncf %135 : vector<8x64xf32> to vector<8x64xbf16>
    %137 = vector.extract_strided_slice %136 {offsets = [0, 0], sizes = [8, 32], strides = [1, 1]} : vector<8x64xbf16> to vector<8x32xbf16>
    %c0_44 = arith.constant 0 : index
    %c0_45 = arith.constant 0 : index
    %c0_46 = arith.constant 0 : index
    %138 = vector.load %arg11[%c0_44, %c0_45, %c0_46] : memref<2x2x32xf32, #tpu.memory_space<vmem>>, vector<1x2x32xf32>
    %139 = vector.shape_cast %138 : vector<1x2x32xf32> to vector<2x32xf32>
    %c0_47 = arith.constant 0 : index
    %c0_48 = arith.constant 0 : index
    %c0_49 = arith.constant 0 : index
    %140 = vector.load %arg10[%c0_47, %c0_48, %c0_49] : memref<2x32x32xbf16, #tpu.memory_space<vmem>>, vector<1x32x32xbf16>
    %141 = vector.shape_cast %140 : vector<1x32x32xbf16> to vector<32x32xbf16>
    %cst_50 = arith.constant dense<0.000000e+00> : vector<8x32xf32>
    %142 = tpu.matmul %137, %141, %cst_50 {dimension_numbers = #tpu.dot_dimension_numbers<[1], [0], [0], [1], [0, 0, 1, 1], [], []>} : vector<8x32xbf16>, vector<32x32xbf16>, vector<8x32xf32> -> vector<8x32xf32>
    %143 = vector.extract_strided_slice %139 {offsets = [0, 0], sizes = [1, 32], strides = [1, 1]} : vector<2x32xf32> to vector<1x32xf32>
    %144 = vector.broadcast %143 : vector<1x32xf32> to vector<8x32xf32>
    %145 = arith.addf %142, %144 : vector<8x32xf32>
    %146 = vector.extract_strided_slice %145 {offsets = [0, 0], sizes = [8, 16], strides = [1, 1]} : vector<8x32xf32> to vector<8x16xf32>
    %147 = math.tanh %146 : vector<8x16xf32>
    %148 = vector.extract_strided_slice %145 {offsets = [0, 16], sizes = [8, 16], strides = [1, 1]} : vector<8x32xf32> to vector<8x16xf32>
    %cst_51 = arith.constant 5.000000e-01 : f32
    %149 = vector.broadcast %cst_51 : f32 to vector<8x16xf32>
    %150 = arith.mulf %149, %148 : vector<8x16xf32>
    %151 = math.tanh %150 : vector<8x16xf32>
    %cst_52 = arith.constant 1.000000e+00 : f32
    %152 = vector.broadcast %cst_52 : f32 to vector<8x16xf32>
    %153 = arith.addf %152, %151 : vector<8x16xf32>
    %cst_53 = arith.constant 5.000000e-01 : f32
    %154 = vector.broadcast %cst_53 : f32 to vector<8x16xf32>
    %155 = arith.mulf %154, %153 : vector<8x16xf32>
    %156 = arith.mulf %147, %155 : vector<8x16xf32>
    %157 = vector.extract_strided_slice %139 {offsets = [1, 0], sizes = [1, 16], strides = [1, 1]} : vector<2x32xf32> to vector<1x16xf32>
    %158 = vector.broadcast %157 : vector<1x16xf32> to vector<8x16xf32>
    %159 = arith.mulf %156, %158 : vector<8x16xf32>
    %cst_54 = arith.constant dense<0.000000e+00> : vector<8xf32>
    %160 = vector.multi_reduction <add>, %159, %cst_54 [1] : vector<8x16xf32> to vector<8xf32>
    %161 = vector.shape_cast %160 : vector<8xf32> to vector<8x1xf32>
    %162 = vector.extract_strided_slice %136 {offsets = [0, 32], sizes = [8, 32], strides = [1, 1]} : vector<8x64xbf16> to vector<8x32xbf16>
    %c1 = arith.constant 1 : index
    %c0_55 = arith.constant 0 : index
    %c0_56 = arith.constant 0 : index
    %163 = vector.load %arg11[%c1, %c0_55, %c0_56] : memref<2x2x32xf32, #tpu.memory_space<vmem>>, vector<1x2x32xf32>
    %164 = vector.shape_cast %163 : vector<1x2x32xf32> to vector<2x32xf32>
    %c1_57 = arith.constant 1 : index
    %c0_58 = arith.constant 0 : index
    %c0_59 = arith.constant 0 : index
    %165 = vector.load %arg10[%c1_57, %c0_58, %c0_59] : memref<2x32x32xbf16, #tpu.memory_space<vmem>>, vector<1x32x32xbf16>
    %166 = vector.shape_cast %165 : vector<1x32x32xbf16> to vector<32x32xbf16>
    %cst_60 = arith.constant dense<0.000000e+00> : vector<8x32xf32>
    %167 = tpu.matmul %162, %166, %cst_60 {dimension_numbers = #tpu.dot_dimension_numbers<[1], [0], [0], [1], [0, 0, 1, 1], [], []>} : vector<8x32xbf16>, vector<32x32xbf16>, vector<8x32xf32> -> vector<8x32xf32>
    %168 = vector.extract_strided_slice %164 {offsets = [0, 0], sizes = [1, 32], strides = [1, 1]} : vector<2x32xf32> to vector<1x32xf32>
    %169 = vector.broadcast %168 : vector<1x32xf32> to vector<8x32xf32>
    %170 = arith.addf %167, %169 : vector<8x32xf32>
    %171 = vector.extract_strided_slice %170 {offsets = [0, 0], sizes = [8, 16], strides = [1, 1]} : vector<8x32xf32> to vector<8x16xf32>
    %172 = math.tanh %171 : vector<8x16xf32>
    %173 = vector.extract_strided_slice %170 {offsets = [0, 16], sizes = [8, 16], strides = [1, 1]} : vector<8x32xf32> to vector<8x16xf32>
    %cst_61 = arith.constant 5.000000e-01 : f32
    %174 = vector.broadcast %cst_61 : f32 to vector<8x16xf32>
    %175 = arith.mulf %174, %173 : vector<8x16xf32>
    %176 = math.tanh %175 : vector<8x16xf32>
    %cst_62 = arith.constant 1.000000e+00 : f32
    %177 = vector.broadcast %cst_62 : f32 to vector<8x16xf32>
    %178 = arith.addf %177, %176 : vector<8x16xf32>
    %cst_63 = arith.constant 5.000000e-01 : f32
    %179 = vector.broadcast %cst_63 : f32 to vector<8x16xf32>
    %180 = arith.mulf %179, %178 : vector<8x16xf32>
    %181 = arith.mulf %172, %180 : vector<8x16xf32>
    %182 = vector.extract_strided_slice %164 {offsets = [1, 0], sizes = [1, 16], strides = [1, 1]} : vector<2x32xf32> to vector<1x16xf32>
    %183 = vector.broadcast %182 : vector<1x16xf32> to vector<8x16xf32>
    %184 = arith.mulf %181, %183 : vector<8x16xf32>
    %cst_64 = arith.constant dense<0.000000e+00> : vector<8xf32>
    %185 = vector.multi_reduction <add>, %184, %cst_64 [1] : vector<8x16xf32> to vector<8xf32>
    %186 = vector.shape_cast %185 : vector<8xf32> to vector<8x1xf32>
    %187 = tpu.concatenate %161, %186 in 1 : vector<8x1xf32>, vector<8x1xf32> -> vector<8x2xf32>
    %188 = tpu.iota {dimensions = array<i32: 0>} : vector<8x1xi32>
    %c2_i32 = arith.constant 2 : i32
    %189 = arith.muli %arg1, %c2_i32 : i32
    %190 = arith.addi %189, %arg2 : i32
    %c8_i32 = arith.constant 8 : i32
    %191 = arith.muli %190, %c8_i32 : i32
    %192 = vector.broadcast %191 : i32 to vector<8x1xi32>
    %193 = arith.addi %192, %188 : vector<8x1xi32>
    %c20_i32 = arith.constant 20 : i32
    %194 = vector.broadcast %c20_i32 : i32 to vector<8x1xi32>
    %195 = arith.cmpi slt, %193, %194 : vector<8x1xi32>
    %cst_65 = arith.constant 0xFF800000 : f32
    %196 = vector.shape_cast %195 : vector<8x1xi1> to vector<8x1xi1>
    %197 = vector.broadcast %196 : vector<8x1xi1> to vector<8x2xi1>
    %198 = vector.broadcast %cst_65 : f32 to vector<8x2xf32>
    %199 = arith.select %197, %187, %198 : vector<8x2xi1>, vector<8x2xf32>
    %c0_66 = arith.constant 0 : index
    %c0_67 = arith.constant 0 : index
    %200 = vector.load %arg14[%c0_66, %c0_67] : memref<1x2xf32, #tpu.memory_space<vmem>>, vector<1x2xf32>
    %cst_68 = arith.constant dense<0xFF800000> : vector<2xf32>
    %201 = vector.multi_reduction <maximumf>, %199, %cst_68 [0] : vector<8x2xf32> to vector<2xf32>
    %202 = vector.shape_cast %201 : vector<2xf32> to vector<1x2xf32>
    %203 = arith.maximumf %200, %202 : vector<1x2xf32>
    %204 = arith.subf %200, %203 : vector<1x2xf32>
    %205 = math.exp %204 : vector<1x2xf32>
    %206 = vector.broadcast %203 : vector<1x2xf32> to vector<8x2xf32>
    %207 = arith.subf %199, %206 : vector<8x2xf32>
    %208 = math.exp %207 : vector<8x2xf32>
    %c0_69 = arith.constant 0 : index
    %c0_70 = arith.constant 0 : index
    %209 = vector.load %arg15[%c0_69, %c0_70] : memref<1x2xf32, #tpu.memory_space<vmem>>, vector<1x2xf32>
    %210 = arith.mulf %205, %209 : vector<1x2xf32>
    %cst_71 = arith.constant dense<0.000000e+00> : vector<2xf32>
    %211 = vector.multi_reduction <add>, %208, %cst_71 [0] : vector<8x2xf32> to vector<2xf32>
    %212 = vector.shape_cast %211 : vector<2xf32> to vector<1x2xf32>
    %213 = arith.addf %210, %212 : vector<1x2xf32>
    %c0_72 = arith.constant 0 : index
    %c0_73 = arith.constant 0 : index
    %214 = vector.load %arg15[%c0_72, %c0_73] : memref<1x2xf32, #tpu.memory_space<vmem>>, vector<1x2xf32>
    tpu.vector_store %arg15[%c0_72, %c0_73], %213 {strides = array<i32>} : memref<1x2xf32, #tpu.memory_space<vmem>>, vector<1x2xf32>,
    %c0_74 = arith.constant 0 : index
    %c0_75 = arith.constant 0 : index
    %215 = vector.load %arg14[%c0_74, %c0_75] : memref<1x2xf32, #tpu.memory_space<vmem>>, vector<1x2xf32>
    tpu.vector_store %arg14[%c0_74, %c0_75], %203 {strides = array<i32>} : memref<1x2xf32, #tpu.memory_space<vmem>>, vector<1x2xf32>,
    %216 = vector.extract_strided_slice %136 {offsets = [0, 0], sizes = [8, 32], strides = [1, 1]} : vector<8x64xbf16> to vector<8x32xbf16>
    %217 = arith.extf %216 : vector<8x32xbf16> to vector<8x32xf32>
    %218 = vector.extract_strided_slice %208 {offsets = [0, 0], sizes = [8, 1], strides = [1, 1]} : vector<8x2xf32> to vector<8x1xf32>
    %219 = vector.broadcast %218 : vector<8x1xf32> to vector<8x32xf32>
    %220 = arith.mulf %217, %219 : vector<8x32xf32>
    %cst_76 = arith.constant dense<0.000000e+00> : vector<32xf32>
    %221 = vector.multi_reduction <add>, %220, %cst_76 [0] : vector<8x32xf32> to vector<32xf32>
    %222 = vector.shape_cast %221 : vector<32xf32> to vector<1x32xf32>
    %223 = vector.extract_strided_slice %205 {offsets = [0, 0], sizes = [1, 1], strides = [1, 1]} : vector<1x2xf32> to vector<1x1xf32>
    %c0_77 = arith.constant 0 : index
    %c0_78 = arith.constant 0 : index
    %224 = vector.load %arg16[%c0_77, %c0_78] : memref<2x32xf32, #tpu.memory_space<vmem>>, vector<1x32xf32>
    %225 = vector.broadcast %223 : vector<1x1xf32> to vector<1x32xf32>
    %226 = arith.mulf %225, %224 : vector<1x32xf32>
    %227 = arith.addf %226, %222 : vector<1x32xf32>
    %c0_79 = arith.constant 0 : index
    %c0_80 = arith.constant 0 : index
    %228 = vector.load %arg16[%c0_79, %c0_80] : memref<2x32xf32, #tpu.memory_space<vmem>>, vector<1x32xf32>
    tpu.vector_store %arg16[%c0_79, %c0_80], %227 {strides = array<i32>} : memref<2x32xf32, #tpu.memory_space<vmem>>, vector<1x32xf32>,
    %229 = vector.extract_strided_slice %136 {offsets = [0, 32], sizes = [8, 32], strides = [1, 1]} : vector<8x64xbf16> to vector<8x32xbf16>
    %230 = arith.extf %229 : vector<8x32xbf16> to vector<8x32xf32>
    %231 = vector.extract_strided_slice %208 {offsets = [0, 1], sizes = [8, 1], strides = [1, 1]} : vector<8x2xf32> to vector<8x1xf32>
    %232 = vector.broadcast %231 : vector<8x1xf32> to vector<8x32xf32>
    %233 = arith.mulf %230, %232 : vector<8x32xf32>
    %cst_81 = arith.constant dense<0.000000e+00> : vector<32xf32>
    %234 = vector.multi_reduction <add>, %233, %cst_81 [0] : vector<8x32xf32> to vector<32xf32>
    %235 = vector.shape_cast %234 : vector<32xf32> to vector<1x32xf32>
    %236 = vector.extract_strided_slice %205 {offsets = [0, 1], sizes = [1, 1], strides = [1, 1]} : vector<1x2xf32> to vector<1x1xf32>
    %c1_82 = arith.constant 1 : index
    %c0_83 = arith.constant 0 : index
    %237 = vector.load %arg16[%c1_82, %c0_83] : memref<2x32xf32, #tpu.memory_space<vmem>>, vector<1x32xf32>
    %238 = vector.broadcast %236 : vector<1x1xf32> to vector<1x32xf32>
    %239 = arith.mulf %238, %237 : vector<1x32xf32>
    %240 = arith.addf %239, %235 : vector<1x32xf32>
    %c1_84 = arith.constant 1 : index
    %c0_85 = arith.constant 0 : index
    %241 = vector.load %arg16[%c1_84, %c0_85] : memref<2x32xf32, #tpu.memory_space<vmem>>, vector<1x32xf32>
    tpu.vector_store %arg16[%c1_84, %c0_85], %240 {strides = array<i32>} : memref<2x32xf32, #tpu.memory_space<vmem>>, vector<1x32xf32>,
    %c1_i32 = arith.constant 1 : i32
    %242 = arith.cmpi eq, %arg2, %c1_i32 : i32
    %243 = arith.extui %242 : i1 to i32
    %c0_i32_86 = arith.constant 0 : i32
    %244 = arith.cmpi ne, %243, %c0_i32_86 : i32
    scf.if %244 {
      %c0_87 = arith.constant 0 : index
      %c0_88 = arith.constant 0 : index
      %245 = vector.load %arg16[%c0_87, %c0_88] : memref<2x32xf32, #tpu.memory_space<vmem>>, vector<2x32xf32>
      %c0_89 = arith.constant 0 : index
      %c0_90 = arith.constant 0 : index
      %c0_91 = arith.constant 0 : index
      %c0_92 = arith.constant 0 : index
      %246 = vector.load %arg12[%c0_89, %c0_90, %c0_91, %c0_92] : memref<1x1x2x32xf32, #tpu.memory_space<vmem>>, vector<1x1x2x32xf32>
      %247 = vector.shape_cast %246 : vector<1x1x2x32xf32> to vector<2x32xf32>
      %248 = vector.shape_cast %245 : vector<2x32xf32> to vector<1x1x2x32xf32>
      tpu.vector_store %arg12[%c0_89, %c0_90, %c0_91, %c0_92], %248 {strides = array<i32>} : memref<1x1x2x32xf32, #tpu.memory_space<vmem>>, vector<1x1x2x32xf32>,
      %c0_93 = arith.constant 0 : index
      %c0_94 = arith.constant 0 : index
      %249 = vector.load %arg14[%c0_93, %c0_94] : memref<1x2xf32, #tpu.memory_space<vmem>>, vector<1x2xf32>
      %c0_95 = arith.constant 0 : index
      %c0_96 = arith.constant 0 : index
      %c0_97 = arith.constant 0 : index
      %c0_98 = arith.constant 0 : index
      %250 = vector.load %arg13[%c0_95, %c0_96, %c0_97, %c0_98] : memref<1x1x2x2xf32, #tpu.memory_space<vmem>>, vector<1x1x1x2xf32>
      %251 = vector.shape_cast %250 : vector<1x1x1x2xf32> to vector<1x2xf32>
      %252 = vector.shape_cast %249 : vector<1x2xf32> to vector<1x1x1x2xf32>
      tpu.vector_store %arg13[%c0_95, %c0_96, %c0_97, %c0_98], %252 {strides = array<i32>} : memref<1x1x2x2xf32, #tpu.memory_space<vmem>>, vector<1x1x1x2xf32>,
      %c0_99 = arith.constant 0 : index
      %c0_100 = arith.constant 0 : index
      %253 = vector.load %arg15[%c0_99, %c0_100] : memref<1x2xf32, #tpu.memory_space<vmem>>, vector<1x2xf32>
      %c0_101 = arith.constant 0 : index
      %c0_102 = arith.constant 0 : index
      %c1_103 = arith.constant 1 : index
      %c0_104 = arith.constant 0 : index
      %254 = vector.load %arg13[%c0_101, %c0_102, %c1_103, %c0_104] : memref<1x1x2x2xf32, #tpu.memory_space<vmem>>, vector<1x1x1x2xf32>
      %255 = vector.shape_cast %254 : vector<1x1x1x2xf32> to vector<1x2xf32>
      %256 = vector.shape_cast %253 : vector<1x2xf32> to vector<1x1x1x2xf32>
      tpu.vector_store %arg13[%c0_101, %c0_102, %c1_103, %c0_104], %256 {strides = array<i32>} : memref<1x1x2x2xf32, #tpu.memory_space<vmem>>, vector<1x1x1x2xf32>,
    } else {
    }
    return
  }
  func.func @transform_0(%arg0: i32, %arg1: i32, %arg2: i32) -> (i32, i32, i32) {
    %c2_i32 = arith.constant 2 : i32
    %0 = arith.muli %arg1, %c2_i32 : i32
    %1 = arith.addi %0, %arg2 : i32
    %c0_i32 = arith.constant 0 : i32
    %c0_i32_0 = arith.constant 0 : i32
    return %arg0, %1, %c0_i32 : i32, i32, i32
  }
  func.func @transform_1(%arg0: i32, %arg1: i32, %arg2: i32) -> (i32, i32) {
    %c0_i32 = arith.constant 0 : i32
    %c0_i32_0 = arith.constant 0 : i32
    %c0_i32_1 = arith.constant 0 : i32
    return %c0_i32, %c0_i32_0 : i32, i32
  }
  func.func @transform_2(%arg0: i32, %arg1: i32, %arg2: i32) -> (i32, i32) {
    %c0_i32 = arith.constant 0 : i32
    %c0_i32_0 = arith.constant 0 : i32
    %c0_i32_1 = arith.constant 0 : i32
    return %c0_i32, %c0_i32_0 : i32, i32
  }
  func.func @transform_3(%arg0: i32, %arg1: i32, %arg2: i32) -> (i32, i32) {
    %c0_i32 = arith.constant 0 : i32
    %c0_i32_0 = arith.constant 0 : i32
    %c0_i32_1 = arith.constant 0 : i32
    return %c0_i32, %c0_i32_0 : i32, i32
  }
  func.func @transform_4(%arg0: i32, %arg1: i32, %arg2: i32) -> (i32, i32) {
    %c0_i32 = arith.constant 0 : i32
    %c0_i32_0 = arith.constant 0 : i32
    %c0_i32_1 = arith.constant 0 : i32
    return %c0_i32, %c0_i32_0 : i32, i32
  }
  func.func @transform_5(%arg0: i32, %arg1: i32, %arg2: i32) -> (i32, i32) {
    %c0_i32 = arith.constant 0 : i32
    %c0_i32_0 = arith.constant 0 : i32
    %c0_i32_1 = arith.constant 0 : i32
    return %c0_i32, %c0_i32_0 : i32, i32
  }
  func.func @transform_6(%arg0: i32, %arg1: i32, %arg2: i32) -> (i32, i32) {
    %c0_i32 = arith.constant 0 : i32
    %c0_i32_0 = arith.constant 0 : i32
    %c0_i32_1 = arith.constant 0 : i32
    return %c0_i32, %c0_i32_0 : i32, i32
  }
  func.func @transform_7(%arg0: i32, %arg1: i32, %arg2: i32) -> (i32, i32, i32) {
    %c0_i32 = arith.constant 0 : i32
    %c0_i32_0 = arith.constant 0 : i32
    %c0_i32_1 = arith.constant 0 : i32
    %c0_i32_2 = arith.constant 0 : i32
    return %c0_i32, %c0_i32_0, %c0_i32_1 : i32, i32, i32
  }
  func.func @transform_8(%arg0: i32, %arg1: i32, %arg2: i32) -> (i32, i32, i32) {
    %c0_i32 = arith.constant 0 : i32
    %c0_i32_0 = arith.constant 0 : i32
    %c0_i32_1 = arith.constant 0 : i32
    %c0_i32_2 = arith.constant 0 : i32
    return %c0_i32, %c0_i32_0, %c0_i32_1 : i32, i32, i32
  }
  func.func @transform_9(%arg0: i32, %arg1: i32, %arg2: i32) -> (i32, i32, i32, i32) {
    %c0_i32 = arith.constant 0 : i32
    %c0_i32_0 = arith.constant 0 : i32
    %c0_i32_1 = arith.constant 0 : i32
    return %arg0, %arg1, %c0_i32, %c0_i32_0 : i32, i32, i32, i32
  }
  func.func @transform_10(%arg0: i32, %arg1: i32, %arg2: i32) -> (i32, i32, i32, i32) {
    %c0_i32 = arith.constant 0 : i32
    %c0_i32_0 = arith.constant 0 : i32
    %c0_i32_1 = arith.constant 0 : i32
    return %arg0, %arg1, %c0_i32, %c0_i32_0 : i32, i32, i32, i32
  }
}

</mosaic_0001>

<llo_original>
// kernel: tpu_custom_call.1
$region0: #{tpu_custom_call.1}
  #allocation0 [shape = 'u32[]', space=smem, size = 0x4, offset = 0x4, fixed_abs, tag = 'smem constant byte address 0x4 - core index']
  #allocation1 [shape = 'u32[144,128]{1,0:T(1,128)}', space=vmem, size = 0x12000, scoped, tag = 'internal scratch']
  #allocation2 [shape = 'f32[1,2]{1,0:T(1,128)}', space=vmem, size = 0x200, scoped, tag = 'scratch operand']
  #allocation3 [shape = 'f32[1,2]{1,0:T(1,128)}', space=vmem, size = 0x200, scoped, tag = 'scratch operand']
  #allocation4 [shape = 'f32[2,32]{1,0:T(2,128)}', space=vmem, size = 0x400, scoped, tag = 'scratch operand']
  %s0 = inlined_call_operand.hbm [shape: bf16[2,32,32], index: 0, kind: input, shape index: {}]
  %s1 = inlined_call_operand.hbm [shape: bf16[32,32], index: 1, kind: input, shape index: {}]
  %s2 = inlined_call_operand.hbm [shape: f32[3,32], index: 2, kind: input, shape index: {}]
  %s3 = inlined_call_operand.hbm [shape: bf16[32,32], index: 3, kind: input, shape index: {}]
  %s4 = inlined_call_operand.hbm [shape: f32[3,32], index: 4, kind: input, shape index: {}]
  %s5 = inlined_call_operand.vmem [shape: bf16[32,64], index: 5, kind: input, shape index: {}]
  %s6 = inlined_call_operand.vmem [shape: f32[3,64], index: 6, kind: input, shape index: {}]
  %s7 = inlined_call_operand.hbm [shape: bf16[2,32,32], index: 7, kind: input, shape index: {}]
  %s8 = inlined_call_operand.vmem [shape: f32[2,2,32], index: 8, kind: input, shape index: {}]
  %s9 = inlined_call_operand.hbm [shape: f32[2,2,2,32], index: 9, kind: output, shape index: {0}]
  %s10 = inlined_call_operand.hbm [shape: f32[2,2,2,2], index: 10, kind: output, shape index: {1}]
  %11 = xla_tuple %s9, %s10
  %s12 = sld [smem:[#allocation0]]
  $region109: #{tpu_custom_call.1} parent=0
    _
  %s14 = ssub.s32 1, %s12
  %s15 = scalar_select 0, %s14, %s12
  $region1: #{tpu_custom_call.1} parent=0
    #allocation5 [shape = 'u8[4096]{0}', space=vmem, size = 0x1000, scoped, tag = 'input window, operand 0']
    #allocation6 [shape = 's32[2]{0}', space=sflag, size = 0x8, scoped, tag = 'scoped memory for tpu_custom_call.1']
    #allocation7 [shape = 's32[2]{0}', space=sflag, size = 0x8, scoped, tag = 'scoped memory for tpu_custom_call.1']
    #allocation8 [shape = 'u8[8192]{0}', space=vmem, size = 0x2000, scoped, tag = 'input window, operand 1, single buffered']
    #allocation9 [shape = 's32[1]{0}', space=sflag, size = 0x4, scoped, tag = 'scoped memory for tpu_custom_call.1']
    #allocation10 [shape = 'u8[2048]{0}', space=vmem, size = 0x800, scoped, tag = 'input window, operand 2, single buffered']
    #allocation11 [shape = 'u8[8192]{0}', space=vmem, size = 0x2000, scoped, tag = 'input window, operand 3, single buffered']
    #allocation12 [shape = 's32[1]{0}', space=sflag, size = 0x4, scoped, tag = 'scoped memory for tpu_custom_call.1']
    #allocation13 [shape = 'u8[2048]{0}', space=vmem, size = 0x800, scoped, tag = 'input window, operand 4, single buffered']
    #allocation14 [shape = 'u8[16384]{0}', space=vmem, size = 0x4000, scoped, tag = 'input window, operand 7, single buffered']
    #allocation15 [shape = 's32[1]{0}', space=sflag, size = 0x4, scoped, tag = 'scoped memory for tpu_custom_call.1']
    #allocation16 [shape = 'u8[2048]{0}', space=vmem, size = 0x800, scoped, tag = 'output window, operand 0']
    #allocation17 [shape = 'u8[2048]{0}', space=vmem, size = 0x800, scoped, tag = 'output window, operand 1']
    #allocation18 [shape = 's32[2]{0}', space=sflag, size = 0x8, scoped, tag = 'scoped memory for tpu_custom_call.1']
    %16 = vsyncpa [#allocation6], 0
    %s17 = scalar_lea.sflag [#allocation6], 1
    %18 = vsyncpa %s17, 0
    %19 = vsyncpa [#allocation9], 0
    %20 = vsyncpa [#allocation12], 0
    %21 = vsyncpa [#allocation15], 0
    %22 = vsyncpa [#allocation7], 0
    %s23 = scalar_lea.sflag [#allocation7], 1
    %24 = vsyncpa %s23, 0
    %25 = vsyncpa [#allocation18], 0
    %s26 = scalar_lea.sflag [#allocation18], 1
    %27 = vsyncpa %s26, 0
    loop: start=0, step=1, limit=10
    $region2: #{tpu_custom_call.1} parent=1 // loop_pre_header
      _
    $region3: #{tpu_custom_call.1} parent=1 // loop_header
      %s29 = sphi 0, %s33
      %p30 = scmp.ge.s32.totalorder %s29, 10
      %s36 = sphi 0, %s55
      %s37 = sphi 0, %s51
      %s38 = sphi 0, %s47
      %s39 = sphi 0, %s36
      %s40 = sphi 0, %s37
      %s41 = sphi 0, %s38
      %s42 = sphi 0, %s39
      %s43 = sphi 0, %s40
      %s44 = sphi 0, %s41
      %s64 = sphi 0, %s66
      %s67 = sphi 0, %s64
      %s68 = sphi 0, %s67
      %s84 = sphi 0, %s68
      %s88 = sphi 0, %s88
      %s90 = sphi 0, %s88
      %s91 = sphi 0, %s90
      %s105 = sphi 0, %s91
      %s109 = sphi 0, %s109
      %s111 = sphi 0, %s109
      %s112 = sphi 0, %s111
      %s126 = sphi 0, %s112
      %s130 = sphi 0, %s130
      %s132 = sphi 0, %s130
      %s133 = sphi 0, %s132
      %s147 = sphi 0, %s133
      %s151 = sphi 0, %s151
      %s153 = sphi 0, %s151
      %s154 = sphi 0, %s153
      %s168 = sphi 0, %s154
      %s172 = sphi 0, %s172
      %s174 = sphi 0, %s172
      %s175 = sphi 0, %s174
      %s189 = sphi 0, %s175
      %s193 = sphi 0, %s193
      %s195 = sphi 0, %s193
      %s196 = sphi 0, %s195
      %s210 = sphi 0, %s196
      %s214 = sphi 0, %s214
      %s216 = sphi 0, %s214
      %s217 = sphi 0, %s216
      %s231 = sphi 0, %s217
      %s235 = sphi 0, %s235
      %s237 = sphi 0, %s235
      %s238 = sphi 0, %s237
      %s252 = sphi 0, %s238
      %s260 = sphi 0, %s262
      %s263 = sphi 0, %s260
      %s264 = sphi 0, %s263
      %s280 = sphi 0, %s264
      %s288 = sphi 0, %s290
      %s291 = sphi 0, %s288
      %s292 = sphi 0, %s291
      %s308 = sphi 0, %s292
    $region4: #{tpu_custom_call.1} parent=1 // loop_header_branch
      %32 = sbr.rel (%p30) target = $region8
    $region5: #{tpu_custom_call.1} parent=1 // loop_body
      %s34 = ssub.s32 %s29, 1
      %s35 = ssub.s32 %s29, 2
      %s45 = sadd.s32 1, %s38
      %p46 = scmp.ge.s32.totalorder %s45, 2
      %s47 = scalar_select %p46, 0, %s45
      %s48 = sadd.s32 1, %s37
      %s49 = scalar_select %p46, %s48, %s37
      %p50 = scmp.ge.s32.totalorder %s49, 2
      %s51 = scalar_select %p50, 0, %s49
      %s52 = sadd.s32 1, %s36
      %s53 = scalar_select %p50, %s52, %s36
      %p54 = scmp.ge.s32.totalorder %s53, 2
      %s55 = scalar_select %p54, 0, %s53
      %s56 = smul.u32 %s37, 2
      %s57 = sadd.s32 %s56, %s38
      %s58 = smul.u32 %s51, 2
      %s59 = sadd.s32 %s58, %s47
      %s60 = ssub.s32 %s36, %s55
      %s61 = ssub.s32 %s57, %s59
      %s62 = sor.u32 %s60, %s61
      %p63 = scmp.eq.s32.totalorder %s62, 0
      %s65 = sadd.s32 %s64, 1
      %s66 = scalar_select %p63, %s64, %s65
      %p69 = pneg %p63
      %p70 = scmp.eq.s32.totalorder %s29, 7
      %p71 = por %p69, %p70
      %p72 = scmp.ne.s32.totalorder %s64, %s67
      %p73 = scmp.eq.s32.totalorder %s29, 0
      %p74 = por %p72, %p73
      %p75 = scmp.ne.s32.totalorder %s64, %s67
      %p76 = scmp.eq.s32.totalorder %s34, 7
      %p77 = por %p75, %p76
      %p78 = scmp.ne.s32.totalorder %s67, %s68
      %p79 = scmp.eq.s32.totalorder %s34, 0
      %p80 = por %p78, %p79
      %p81 = scmp.ne.s32.totalorder %s67, %s68
      %p82 = scmp.eq.s32.totalorder %s35, 7
      %p83 = por %p81, %p82
      %p85 = scmp.ne.s32.totalorder %s68, %s84
      %p86 = scmp.eq.s32.totalorder %s35, 0
      %p87 = por %p85, %p86
      %s89 = sadd.s32 %s88, 1
      %p92 = scmp.eq.s32.totalorder %s29, 7
      %p93 = scmp.ne.s32.totalorder %s88, %s90
      %p94 = scmp.eq.s32.totalorder %s29, 0
      %p95 = por %p93, %p94
      %p96 = scmp.ne.s32.totalorder %s88, %s90
      %p97 = scmp.eq.s32.totalorder %s34, 7
      %p98 = por %p96, %p97
      %p99 = scmp.ne.s32.totalorder %s90, %s91
      %p100 = scmp.eq.s32.totalorder %s34, 0
      %p101 = por %p99, %p100
      %p102 = scmp.ne.s32.totalorder %s90, %s91
      %p103 = scmp.eq.s32.totalorder %s35, 7
      %p104 = por %p102, %p103
      %p106 = scmp.ne.s32.totalorder %s91, %s105
      %p107 = scmp.eq.s32.totalorder %s35, 0
      %p108 = por %p106, %p107
      %s110 = sadd.s32 %s109, 1
      %p113 = scmp.eq.s32.totalorder %s29, 7
      %p114 = scmp.ne.s32.totalorder %s109, %s111
      %p115 = scmp.eq.s32.totalorder %s29, 0
      %p116 = por %p114, %p115
      %p117 = scmp.ne.s32.totalorder %s109, %s111
      %p118 = scmp.eq.s32.totalorder %s34, 7
      %p119 = por %p117, %p118
      %p120 = scmp.ne.s32.totalorder %s111, %s112
      %p121 = scmp.eq.s32.totalorder %s34, 0
      %p122 = por %p120, %p121
      %p123 = scmp.ne.s32.totalorder %s111, %s112
      %p124 = scmp.eq.s32.totalorder %s35, 7
      %p125 = por %p123, %p124
      %p127 = scmp.ne.s32.totalorder %s112, %s126
      %p128 = scmp.eq.s32.totalorder %s35, 0
      %p129 = por %p127, %p128
      %s131 = sadd.s32 %s130, 1
      %p134 = scmp.eq.s32.totalorder %s29, 7
      %p135 = scmp.ne.s32.totalorder %s130, %s132
      %p136 = scmp.eq.s32.totalorder %s29, 0
      %p137 = por %p135, %p136
      %p138 = scmp.ne.s32.totalorder %s130, %s132
      %p139 = scmp.eq.s32.totalorder %s34, 7
      %p140 = por %p138, %p139
      %p141 = scmp.ne.s32.totalorder %s132, %s133
      %p142 = scmp.eq.s32.totalorder %s34, 0
      %p143 = por %p141, %p142
      %p144 = scmp.ne.s32.totalorder %s132, %s133
      %p145 = scmp.eq.s32.totalorder %s35, 7
      %p146 = por %p144, %p145
      %p148 = scmp.ne.s32.totalorder %s133, %s147
      %p149 = scmp.eq.s32.totalorder %s35, 0
      %p150 = por %p148, %p149
      %s152 = sadd.s32 %s151, 1
      %p155 = scmp.eq.s32.totalorder %s29, 7
      %p156 = scmp.ne.s32.totalorder %s151, %s153
      %p157 = scmp.eq.s32.totalorder %s29, 0
      %p158 = por %p156, %p157
      %p159 = scmp.ne.s32.totalorder %s151, %s153
      %p160 = scmp.eq.s32.totalorder %s34, 7
      %p161 = por %p159, %p160
      %p162 = scmp.ne.s32.totalorder %s153, %s154
      %p163 = scmp.eq.s32.totalorder %s34, 0
      %p164 = por %p162, %p163
      %p165 = scmp.ne.s32.totalorder %s153, %s154
      %p166 = scmp.eq.s32.totalorder %s35, 7
      %p167 = por %p165, %p166
      %p169 = scmp.ne.s32.totalorder %s154, %s168
      %p170 = scmp.eq.s32.totalorder %s35, 0
      %p171 = por %p169, %p170
      %s173 = sadd.s32 %s172, 1
      %p176 = scmp.eq.s32.totalorder %s29, 7
      %p177 = scmp.ne.s32.totalorder %s172, %s174
      %p178 = scmp.eq.s32.totalorder %s29, 0
      %p179 = por %p177, %p178
      %p180 = scmp.ne.s32.totalorder %s172, %s174
      %p181 = scmp.eq.s32.totalorder %s34, 7
      %p182 = por %p180, %p181
      %p183 = scmp.ne.s32.totalorder %s174, %s175
      %p184 = scmp.eq.s32.totalorder %s34, 0
      %p185 = por %p183, %p184
      %p186 = scmp.ne.s32.totalorder %s174, %s175
      %p187 = scmp.eq.s32.totalorder %s35, 7
      %p188 = por %p186, %p187
      %p190 = scmp.ne.s32.totalorder %s175, %s189
      %p191 = scmp.eq.s32.totalorder %s35, 0
      %p192 = por %p190, %p191
      %s194 = sadd.s32 %s193, 1
      %p197 = scmp.eq.s32.totalorder %s29, 7
      %p198 = scmp.ne.s32.totalorder %s193, %s195
      %p199 = scmp.eq.s32.totalorder %s29, 0
      %p200 = por %p198, %p199
      %p201 = scmp.ne.s32.totalorder %s193, %s195
      %p202 = scmp.eq.s32.totalorder %s34, 7
      %p203 = por %p201, %p202
      %p204 = scmp.ne.s32.totalorder %s195, %s196
      %p205 = scmp.eq.s32.totalorder %s34, 0
      %p206 = por %p204, %p205
      %p207 = scmp.ne.s32.totalorder %s195, %s196
      %p208 = scmp.eq.s32.totalorder %s35, 7
      %p209 = por %p207, %p208
      %p211 = scmp.ne.s32.totalorder %s196, %s210
      %p212 = scmp.eq.s32.totalorder %s35, 0
      %p213 = por %p211, %p212
      %s215 = sadd.s32 %s214, 1
      %p218 = scmp.eq.s32.totalorder %s29, 7
      %p219 = scmp.ne.s32.totalorder %s214, %s216
      %p220 = scmp.eq.s32.totalorder %s29, 0
      %p221 = por %p219, %p220
      %p222 = scmp.ne.s32.totalorder %s214, %s216
      %p223 = scmp.eq.s32.totalorder %s34, 7
      %p224 = por %p222, %p223
      %p225 = scmp.ne.s32.totalorder %s216, %s217
      %p226 = scmp.eq.s32.totalorder %s34, 0
      %p227 = por %p225, %p226
      %p228 = scmp.ne.s32.totalorder %s216, %s217
      %p229 = scmp.eq.s32.totalorder %s35, 7
      %p230 = por %p228, %p229
      %p232 = scmp.ne.s32.totalorder %s217, %s231
      %p233 = scmp.eq.s32.totalorder %s35, 0
      %p234 = por %p232, %p233
      %s236 = sadd.s32 %s235, 1
      %p239 = scmp.eq.s32.totalorder %s29, 7
      %p240 = scmp.ne.s32.totalorder %s235, %s237
      %p241 = scmp.eq.s32.totalorder %s29, 0
      %p242 = por %p240, %p241
      %p243 = scmp.ne.s32.totalorder %s235, %s237
      %p244 = scmp.eq.s32.totalorder %s34, 7
      %p245 = por %p243, %p244
      %p246 = scmp.ne.s32.totalorder %s237, %s238
      %p247 = scmp.eq.s32.totalorder %s34, 0
      %p248 = por %p246, %p247
      %p249 = scmp.ne.s32.totalorder %s237, %s238
      %p250 = scmp.eq.s32.totalorder %s35, 7
      %p251 = por %p249, %p250
      %p253 = scmp.ne.s32.totalorder %s238, %s252
      %p254 = scmp.eq.s32.totalorder %s35, 0
      %p255 = por %p253, %p254
      %s256 = ssub.s32 %s36, %s55
      %s257 = ssub.s32 %s37, %s51
      %s258 = sor.u32 %s256, %s257
      %p259 = scmp.eq.s32.totalorder %s258, 0
      %s261 = sadd.s32 %s260, 1
      %s262 = scalar_select %p259, %s260, %s261
      %p265 = pneg %p259
      %p266 = scmp.eq.s32.totalorder %s29, 7
      %p267 = por %p265, %p266
      %p268 = scmp.ne.s32.totalorder %s260, %s263
      %p269 = scmp.eq.s32.totalorder %s29, 0
      %p270 = por %p268, %p269
      %p271 = scmp.ne.s32.totalorder %s260, %s263
      %p272 = scmp.eq.s32.totalorder %s34, 7
      %p273 = por %p271, %p272
      %p274 = scmp.ne.s32.totalorder %s263, %s264
      %p275 = scmp.eq.s32.totalorder %s34, 0
      %p276 = por %p274, %p275
      %p277 = scmp.ne.s32.totalorder %s263, %s264
      %p278 = scmp.eq.s32.totalorder %s35, 7
      %p279 = por %p277, %p278
      %p281 = scmp.ne.s32.totalorder %s264, %s280
      %p282 = scmp.eq.s32.totalorder %s35, 0
      %p283 = por %p281, %p282
      %s284 = ssub.s32 %s36, %s55
      %s285 = ssub.s32 %s37, %s51
      %s286 = sor.u32 %s284, %s285
      %p287 = scmp.eq.s32.totalorder %s286, 0
      %s289 = sadd.s32 %s288, 1
      %s290 = scalar_select %p287, %s288, %s289
      %p293 = pneg %p287
      %p294 = scmp.eq.s32.totalorder %s29, 7
      %p295 = por %p293, %p294
      %p296 = scmp.ne.s32.totalorder %s288, %s291
      %p297 = scmp.eq.s32.totalorder %s29, 0
      %p298 = por %p296, %p297
      %p299 = scmp.ne.s32.totalorder %s288, %s291
      %p300 = scmp.eq.s32.totalorder %s34, 7
      %p301 = por %p299, %p300
      %p302 = scmp.ne.s32.totalorder %s291, %s292
      %p303 = scmp.eq.s32.totalorder %s34, 0
      %p304 = por %p302, %p303
      %p305 = scmp.ne.s32.totalorder %s291, %s292
      %p306 = scmp.eq.s32.totalorder %s35, 7
      %p307 = por %p305, %p306
      %p309 = scmp.ne.s32.totalorder %s292, %s308
      %p310 = scmp.eq.s32.totalorder %s35, 0
      %p311 = por %p309, %p310
      %p312 = scmp.le.s32.totalorder 1, %s29
      %p313 = scmp.lt.s32.totalorder %s29, 9
      %p314 = pnand %p312, %p313
      %p315 = pneg %p314
      // Predicated region
      $region9: #{tpu_custom_call.1} parent=5 // pred_check
        _
      $region10: #{tpu_custom_call.1} parent=5 // pred_check_branch
        %317 = sbr.rel (%p314) target = $region12
      $region11: #{tpu_custom_call.1} parent=5 // pred_region
        %s318 = ssub.s32 %s29, 1
        // Predicated region
        $region13: #{tpu_custom_call.1} parent=11 // pred_check
          %p319 = pneg %p101
        $region14: #{tpu_custom_call.1} parent=11 // pred_check_branch
          %321 = sbr.rel (%p319) target = $region16
        $region15: #{tpu_custom_call.1} parent=11 // pred_region
          %s323 = ssub.s32 256, 256
          %324 = vsyncadd [#allocation9], %s323
          %s325 = sshll.u32 [#allocation8], 4
          %s326 = int_to_ptr.vmem [resolvable:$true] %s325
          %331 = dma.hbm_to_vmem [thread:$0]  %s1, 256, %s326, [#allocation9], 64, 64, 4
        $region16: #{tpu_custom_call.1} parent=11 // pred_fallthru
          _
        // Predicated region
        $region17: #{tpu_custom_call.1} parent=11 // pred_check
          %p332 = pneg %p122
        $region18: #{tpu_custom_call.1} parent=11 // pred_check_branch
          %334 = sbr.rel (%p332) target = $region20
        $region19: #{tpu_custom_call.1} parent=11 // pred_region
          %s336 = ssub.s32 64, 64
          %337 = vsyncadd [#allocation9], %s336
          %s339 = sshll.u32 [#allocation10], 4
          %s340 = int_to_ptr.vmem [resolvable:$true] %s339
          %342 = dma.hbm_to_vmem [thread:$0]  %s2, 64, %s340, [#allocation9]
        $region20: #{tpu_custom_call.1} parent=11 // pred_fallthru
          _
        // Predicated region
        $region21: #{tpu_custom_call.1} parent=11 // pred_check
          %p343 = pneg %p143
        $region22: #{tpu_custom_call.1} parent=11 // pred_check_branch
          %345 = sbr.rel (%p343) target = $region24
        $region23: #{tpu_custom_call.1} parent=11 // pred_region
          %s347 = ssub.s32 256, 256
          %348 = vsyncadd [#allocation12], %s347
          %s349 = sshll.u32 [#allocation11], 4
          %s350 = int_to_ptr.vmem [resolvable:$true] %s349
          %355 = dma.hbm_to_vmem [thread:$0]  %s3, 256, %s350, [#allocation12], 64, 64, 4
        $region24: #{tpu_custom_call.1} parent=11 // pred_fallthru
          _
        // Predicated region
        $region25: #{tpu_custom_call.1} parent=11 // pred_check
          %p356 = pneg %p164
        $region26: #{tpu_custom_call.1} parent=11 // pred_check_branch
          %358 = sbr.rel (%p356) target = $region28
        $region27: #{tpu_custom_call.1} parent=11 // pred_region
          %s360 = ssub.s32 64, 64
          %361 = vsyncadd [#allocation12], %s360
          %s363 = sshll.u32 [#allocation13], 4
          %s364 = int_to_ptr.vmem [resolvable:$true] %s363
          %366 = dma.hbm_to_vmem [thread:$0]  %s4, 64, %s364, [#allocation12]
        $region28: #{tpu_custom_call.1} parent=11 // pred_fallthru
          _
        // Predicated region
        $region29: #{tpu_custom_call.1} parent=11 // pred_check
          %p367 = pneg %p185
        $region30: #{tpu_custom_call.1} parent=11 // pred_check_branch
          %369 = sbr.rel (%p367) target = $region32
        $region31: #{tpu_custom_call.1} parent=11 // pred_region
          _
        $region32: #{tpu_custom_call.1} parent=11 // pred_fallthru
          _
        // Predicated region
        $region33: #{tpu_custom_call.1} parent=11 // pred_check
          %p370 = pneg %p206
        $region34: #{tpu_custom_call.1} parent=11 // pred_check_branch
          %372 = sbr.rel (%p370) target = $region36
        $region35: #{tpu_custom_call.1} parent=11 // pred_region
          _
        $region36: #{tpu_custom_call.1} parent=11 // pred_fallthru
          _
        // Predicated region
        $region37: #{tpu_custom_call.1} parent=11 // pred_check
          %p373 = pneg %p227
        $region38: #{tpu_custom_call.1} parent=11 // pred_check_branch
          %375 = sbr.rel (%p373) target = $region40
        $region39: #{tpu_custom_call.1} parent=11 // pred_region
          %s377 = ssub.s32 512, 512
          %378 = vsyncadd [#allocation15], %s377
          %s379 = sshll.u32 [#allocation14], 4
          %s380 = int_to_ptr.vmem [resolvable:$true] %s379
          %385 = dma.hbm_to_vmem [thread:$0]  %s7, 512, %s380, [#allocation15], 64, 64, 4
        $region40: #{tpu_custom_call.1} parent=11 // pred_fallthru
          _
        // Predicated region
        $region41: #{tpu_custom_call.1} parent=11 // pred_check
          %p386 = pneg %p248
        $region42: #{tpu_custom_call.1} parent=11 // pred_check_branch
          %388 = sbr.rel (%p386) target = $region44
        $region43: #{tpu_custom_call.1} parent=11 // pred_region
          _
        $region44: #{tpu_custom_call.1} parent=11 // pred_fallthru
          _
      $region12: #{tpu_custom_call.1} parent=5 // pred_fallthru
        _
      %p389 = scmp.lt.s32.totalorder %s29, 8
      // Predicated region
      $region45: #{tpu_custom_call.1} parent=5 // pred_check
        %p390 = pneg %p389
      $region46: #{tpu_custom_call.1} parent=5 // pred_check_branch
        %392 = sbr.rel (%p390) target = $region48
      $region47: #{tpu_custom_call.1} parent=5 // pred_region
        // Predicated region
        $region49: #{tpu_custom_call.1} parent=47 // pred_check
          %p393 = pneg %p74
        $region50: #{tpu_custom_call.1} parent=47 // pred_check_branch
          %395 = sbr.rel (%p393) target = $region52
        $region51: #{tpu_custom_call.1} parent=47 // pred_region
          %s396 = sand.u32 %s64, 1
          %s397 = scalar_lea.sflag [#allocation6], %s396
          %s398 = sand.u32 %s64, 1
          %s399 = smul.addr %s398, 4
          %s400 = scalar_lea.vmem [#allocation5], %s399
          %s401 = smul.u32 %s37, 2
          %s402 = sadd.s32 %s401, %s38
          %s404 = ssub.s32 64, 64
          %405 = vsyncadd %s397, %s404
          %s406 = smul.addr %s36, 4
          %s407 = sadd.s32 %s402, %s406
          %s408 = smul.addr %s407, 64
          %s409 = scalar_lea.hbm %s0, %s408
          %s411 = sshll.u32 %s400, 4
          %s412 = int_to_ptr.vmem [resolvable:$true] %s411
          %414 = dma.hbm_to_vmem [thread:$0]  %s409, 64, %s412, %s397
        $region52: #{tpu_custom_call.1} parent=47 // pred_fallthru
          _
      $region48: #{tpu_custom_call.1} parent=5 // pred_fallthru
        _
      %p415 = scmp.le.s32.totalorder 1, %s29
      %p416 = scmp.lt.s32.totalorder %s29, 9
      %p417 = pnand %p415, %p416
      %p418 = pneg %p417
      // Predicated region
      $region53: #{tpu_custom_call.1} parent=5 // pred_check
        _
      $region54: #{tpu_custom_call.1} parent=5 // pred_check_branch
        %420 = sbr.rel (%p417) target = $region56
      $region55: #{tpu_custom_call.1} parent=5 // pred_region
        %s421 = ssub.s32 %s29, 1
        %s422 = sand.u32 %s67, 1
        %s423 = scalar_lea.sflag [#allocation6], %s422
        %s424 = sand.u32 %s67, 1
        %s425 = smul.addr %s424, 4
        %s426 = scalar_lea.vmem [#allocation5], %s425
        // Predicated region
        $region57: #{tpu_custom_call.1} parent=55 // pred_check
          %p427 = pneg %p80
        $region58: #{tpu_custom_call.1} parent=55 // pred_check_branch
          %429 = sbr.rel (%p427) target = $region60
        $region59: #{tpu_custom_call.1} parent=55 // pred_region
          %430 = dma.done %s423, 64
        $region60: #{tpu_custom_call.1} parent=55 // pred_fallthru
          _
        // Predicated region
        $region61: #{tpu_custom_call.1} parent=55 // pred_check
          %p431 = pneg %p101
        $region62: #{tpu_custom_call.1} parent=55 // pred_check_branch
          %433 = sbr.rel (%p431) target = $region64
        $region63: #{tpu_custom_call.1} parent=55 // pred_region
          %434 = dma.done [#allocation9], 256
        $region64: #{tpu_custom_call.1} parent=55 // pred_fallthru
          _
        // Predicated region
        $region65: #{tpu_custom_call.1} parent=55 // pred_check
          %p435 = pneg %p122
        $region66: #{tpu_custom_call.1} parent=55 // pred_check_branch
          %437 = sbr.rel (%p435) target = $region68
        $region67: #{tpu_custom_call.1} parent=55 // pred_region
          %438 = dma.done [#allocation9], 64
        $region68: #{tpu_custom_call.1} parent=55 // pred_fallthru
          _
        // Predicated region
        $region69: #{tpu_custom_call.1} parent=55 // pred_check
          %p439 = pneg %p143
        $region70: #{tpu_custom_call.1} parent=55 // pred_check_branch
          %441 = sbr.rel (%p439) target = $region72
        $region71: #{tpu_custom_call.1} parent=55 // pred_region
          %442 = dma.done [#allocation12], 256
        $region72: #{tpu_custom_call.1} parent=55 // pred_fallthru
          _
        // Predicated region
        $region73: #{tpu_custom_call.1} parent=55 // pred_check
          %p443 = pneg %p164
        $region74: #{tpu_custom_call.1} parent=55 // pred_check_branch
          %445 = sbr.rel (%p443) target = $region76
        $region75: #{tpu_custom_call.1} parent=55 // pred_region
          %446 = dma.done [#allocation12], 64
        $region76: #{tpu_custom_call.1} parent=55 // pred_fallthru
          _
        // Predicated region
        $region77: #{tpu_custom_call.1} parent=55 // pred_check
          %p447 = pneg %p227
        $region78: #{tpu_custom_call.1} parent=55 // pred_check_branch
          %449 = sbr.rel (%p447) target = $region80
        $region79: #{tpu_custom_call.1} parent=55 // pred_region
          %450 = dma.done [#allocation15], 512
        $region80: #{tpu_custom_call.1} parent=55 // pred_fallthru
          _
        %s451 = sand.u32 %s67, 1
        %s452 = scalar_lea.sflag [#allocation6], %s451
        %s453 = sand.u32 %s67, 1
        %s454 = smul.addr %s453, 4
        %s455 = scalar_lea.vmem [#allocation5], %s454
        %p456 = pneg %p80
        %p457 = pneg %p77
        %p458 = pneg %p101
        %p459 = pneg %p98
        %p460 = pneg %p122
        %p461 = pneg %p119
        %p462 = pneg %p143
        %p463 = pneg %p140
        %p464 = pneg %p164
        %p465 = pneg %p161
        %p466 = pneg %p185
        %p467 = pneg %p182
        %p468 = pneg %p206
        %p469 = pneg %p203
        %p470 = pneg %p227
        %p471 = pneg %p224
        %p472 = pneg %p248
        %p473 = pneg %p245
        %p474 = pneg %p276
        %p475 = pneg %p273
        %s476 = sand.u32 %s263, 1
        %s477 = scalar_lea.sflag [#allocation7], %s476
        %s478 = sand.u32 %s263, 1
        %s479 = smul.addr %s478, 2
        %s480 = scalar_lea.vmem [#allocation16], %s479
        %p481 = pneg %p304
        %p482 = pneg %p301
        %s483 = sand.u32 %s291, 1
        %s484 = scalar_lea.sflag [#allocation18], %s483
        %s485 = sand.u32 %s291, 1
        %s486 = smul.addr %s485, 2
        %s487 = scalar_lea.vmem [#allocation17], %s486
        %s488 = smul.u32 %s40, 2
        %s489 = sadd.s32 %s488, %s41
        %p491 = scmp.eq.s32.totalorder %s41, 0
        // Predicated region
        $region81: #{tpu_custom_call.1} parent=55 // pred_check
          %p492 = pneg %p491
        $region82: #{tpu_custom_call.1} parent=55 // pred_check_branch
          %494 = sbr.rel (%p492) target = $region84
        $region83: #{tpu_custom_call.1} parent=55 // pred_region
          %vm495 = vcmask 8192
          %496 = vst.msk [vmem:[#allocation2] sm:$0x1] %vm495, -1e+30
          %497 = vst.msk [vmem:[#allocation3] sm:$0x1] %vm495, 0.0
          %vm498 = vcmask 254976
          %499 = vst.msk [vmem:[#allocation4] sm:$0x3] %vm498, 0.0
        $region84: #{tpu_custom_call.1} parent=55 // pred_fallthru
          _
        %v500 = vld [vmem:[%s426] sm:$0xf]
        %v501 = vld [vmem:[#allocation10] sm:$0x7]
        %v502 = vld [vmem:[#allocation8] sm:$0xf]
        %v503 = vld [vmem:[#allocation8 + $0x4] sm:$0xf]
        %v504 = vld [vmem:[#allocation8 + $0x8] sm:$0xf]
        %v505 = vld [vmem:[#allocation8 + $0xc] sm:$0xf]
        %v506 = vlaneseq
        %v507 = vshrl.u32 %v506, 7
        %v508 = vsub.s32 0, %v507
        %v509 = vrot.slane %v501, %v508
        %v514 = vunpack.c.l.b16 %v502
        %v515 = vunpack.c.l.b16 %v503
        %v516 = vunpack.c.l.b16 %v504
        %v517 = vunpack.c.l.b16 %v505
        %v518 = vpack.c.b16 %v515, %v514
        %v519 = vpack.c.b16 %v517, %v516
        %vm522 = vcmask 261120
        %v524 = vsel %vm522, %v500, 0
        %526 = vmatprep.subr.bf16.mxu0 0
        %527 = vmatpush1.bf16.msra.mxu0 %v518
        %528 = vmatprep.subr.bf16.mxu0 0
        %529 = vmatpush1.bf16.msra.mxu0 %v519
        %530 = vmatprep.subr.bf16.mxu0 0
        %531 = vmatpush1.bf16.msra.mxu0 0
        %532 = vmatprep.subr.bf16.mxu0 0
        %533 = vmatpush1.bf16.msra.mxu0 0
        %534 = vmatprep.subr.bf16.mxu0 0
        %535 = vmatpush1.bf16.msra.mxu0 0
        %536 = vmatprep.subr.bf16.mxu0 0
        %537 = vmatpush1.bf16.msra.mxu0 0
        %538 = vmatprep.subr.bf16.mxu0 0
        %539 = vmatpush1.bf16.msra.mxu0 0
        %540 = vmatprep.subr.bf16.mxu0 0
        %541 = vmatpush1.bf16.msra.mxu0 0
        %542 = vmatprep.subr.bf16.mxu0 0
        %543 = vmatpush1.bf16.msra.mxu0 0
        %544 = vmatprep.subr.bf16.mxu0 0
        %545 = vmatpush1.bf16.msra.mxu0 0
        %546 = vmatprep.subr.bf16.mxu0 0
        %547 = vmatpush1.bf16.msra.mxu0 0
        %548 = vmatprep.subr.bf16.mxu0 0
        %549 = vmatpush1.bf16.msra.mxu0 0
        %550 = vmatprep.subr.bf16.mxu0 0
        %551 = vmatpush1.bf16.msra.mxu0 0
        %552 = vmatprep.subr.bf16.mxu0 0
        %553 = vmatpush1.bf16.msra.mxu0 0
        %554 = vmatprep.subr.bf16.mxu0 0
        %555 = vmatpush1.bf16.msra.mxu0 0
        %556 = vmatprep.subr.bf16.mxu0 0
        %557 = vmatpush1.bf16.msra.mxu0 0
        %558 = vmatprep.mubr.bf16.mxu0 0
        %559 = vmatmul.mubr.bf16.gmra.mrb[0].mxu0 %v524
        %v560 = vpop.f32.mrb[0].mxu0
        %v561 = vadd.f32 %v509, %v560
        %v562 = vpop.f32.mrb[0].mxu0
        %v563 = vpop.f32.mrb[0].mxu0
        %v564 = vpop.f32.mrb[0].mxu0
        %565 = vdwg.mxu0
        %v566 = vsel %vm522, %v561, 0.0
        %567 = vadd.xlane.f32.xlu0 %v566
        %v568 = vpop.xlane.xlu0 %567
        %v569 = vrcp.pop 32.0
        %v570 = vmul.f32 %v568, %v569
        %v571 = vmul.f32 %v561, %v561
        %v572 = vsel %vm522, %v571, 0.0
        %573 = vadd.xlane.f32.xlu0 %v572
        %v574 = vpop.xlane.xlu0 %573
        %v575 = vmul.f32 %v574, %v569
        %v576 = vmul.f32 %v570, %v570
        %v577 = vsub.f32 %v575, %v576
        %v578 = vsub.f32 %v561, %v570
        %v579 = vadd.f32 %v577, 1e-05
        %v580 = vrsqrt.pop %v579
        %v581 = vmul.f32 %v578, %v580
        %v582 = vlaneseq
        %v583 = vshrl.u32 %v582, 7
        %v584 = vsub.s32 1, %v583
        %v585 = vrot.slane %v501, %v584
        %v586 = vmul.f32 %v581, %v585
        %v587 = vlaneseq
        %v588 = vshrl.u32 %v587, 7
        %v589 = vsub.s32 2, %v588
        %v590 = vrot.slane %v501, %v589
        %v591 = vadd.f32 %v586, %v590
        %v592 = vmul.f32 %v591, 0.5
        %v593 = vmul.f32 %v591, 0.044715
        %v594 = vmul.f32 %v593, %v591
        %v595 = vmul.f32 %v594, %v591
        %v596 = vadd.f32 %v591, %v595
        %v597 = vmul.f32 %v596, 0.7978846
        %v598 = vtanh.pop %v597
        %v599 = vadd.f32 %v598, 1.0
        %v600 = vmul.f32 %v592, %v599
        %v601 = vpack.c.bf16 %v600, %v600
        %v602 = vld [vmem:[#allocation13] sm:$0x7]
        %v603 = vld [vmem:[#allocation11] sm:$0xf]
        %v604 = vld [vmem:[#allocation11 + $0x4] sm:$0xf]
        %v605 = vld [vmem:[#allocation11 + $0x8] sm:$0xf]
        %v606 = vld [vmem:[#allocation11 + $0xc] sm:$0xf]
        %v607 = vlaneseq
        %v608 = vshrl.u32 %v607, 7
        %v609 = vsub.s32 0, %v608
        %v610 = vrot.slane %v602, %v609
        %v615 = vunpack.c.l.b16 %v603
        %v616 = vunpack.c.l.b16 %v604
        %v617 = vunpack.c.l.b16 %v605
        %v618 = vunpack.c.l.b16 %v606
        %v619 = vpack.c.b16 %v616, %v615
        %v620 = vpack.c.b16 %v618, %v617
        %v624 = vsel %vm522, %v601, 0
        %626 = vmatprep.subr.bf16.mxu0 0
        %627 = vmatpush1.bf16.msra.mxu0 %v619
        %628 = vmatprep.subr.bf16.mxu0 0
        %629 = vmatpush1.bf16.msra.mxu0 %v620
        %630 = vmatprep.subr.bf16.mxu0 0
        %631 = vmatpush1.bf16.msra.mxu0 0
        %632 = vmatprep.subr.bf16.mxu0 0
        %633 = vmatpush1.bf16.msra.mxu0 0
        %634 = vmatprep.subr.bf16.mxu0 0
        %635 = vmatpush1.bf16.msra.mxu0 0
        %636 = vmatprep.subr.bf16.mxu0 0
        %637 = vmatpush1.bf16.msra.mxu0 0
        %638 = vmatprep.subr.bf16.mxu0 0
        %639 = vmatpush1.bf16.msra.mxu0 0
        %640 = vmatprep.subr.bf16.mxu0 0
        %641 = vmatpush1.bf16.msra.mxu0 0
        %642 = vmatprep.subr.bf16.mxu0 0
        %643 = vmatpush1.bf16.msra.mxu0 0
        %644 = vmatprep.subr.bf16.mxu0 0
        %645 = vmatpush1.bf16.msra.mxu0 0
        %646 = vmatprep.subr.bf16.mxu0 0
        %647 = vmatpush1.bf16.msra.mxu0 0
        %648 = vmatprep.subr.bf16.mxu0 0
        %649 = vmatpush1.bf16.msra.mxu0 0
        %650 = vmatprep.subr.bf16.mxu0 0
        %651 = vmatpush1.bf16.msra.mxu0 0
        %652 = vmatprep.subr.bf16.mxu0 0
        %653 = vmatpush1.bf16.msra.mxu0 0
        %654 = vmatprep.subr.bf16.mxu0 0
        %655 = vmatpush1.bf16.msra.mxu0 0
        %656 = vmatprep.subr.bf16.mxu0 0
        %657 = vmatpush1.bf16.msra.mxu0 0
        %658 = vmatprep.mubr.bf16.mxu0 0
        %659 = vmatmul.mubr.bf16.gmra.mrb[0].mxu0 %v624
        %v660 = vpop.f32.mrb[0].mxu0
        %v661 = vadd.f32 %v610, %v660
        %v662 = vpop.f32.mrb[0].mxu0
        %v663 = vpop.f32.mrb[0].mxu0
        %v664 = vpop.f32.mrb[0].mxu0
        %665 = vdwg.mxu0
        %v666 = vsel %vm522, %v661, 0.0
        %667 = vadd.xlane.f32.xlu0 %v666
        %v668 = vpop.xlane.xlu0 %667
        %v669 = vmul.f32 %v668, %v569
        %v670 = vmul.f32 %v661, %v661
        %v671 = vsel %vm522, %v670, 0.0
        %672 = vadd.xlane.f32.xlu0 %v671
        %v673 = vpop.xlane.xlu0 %672
        %v674 = vmul.f32 %v673, %v569
        %v675 = vmul.f32 %v669, %v669
        %v676 = vsub.f32 %v674, %v675
        %v677 = vsub.f32 %v661, %v669
        %v678 = vadd.f32 %v676, 1e-05
        %v679 = vrsqrt.pop %v678
        %v680 = vmul.f32 %v677, %v679
        %v681 = vlaneseq
        %v682 = vshrl.u32 %v681, 7
        %v683 = vsub.s32 1, %v682
        %v684 = vrot.slane %v602, %v683
        %v685 = vmul.f32 %v680, %v684
        %v686 = vlaneseq
        %v687 = vshrl.u32 %v686, 7
        %v688 = vsub.s32 2, %v687
        %v689 = vrot.slane %v602, %v688
        %v690 = vadd.f32 %v685, %v689
        %v691 = vmul.f32 %v690, 0.5
        %v692 = vmul.f32 %v690, 0.044715
        %v693 = vmul.f32 %v692, %v690
        %v694 = vmul.f32 %v693, %v690
        %v695 = vadd.f32 %v690, %v694
        %v696 = vmul.f32 %v695, 0.7978846
        %v697 = vtanh.pop %v696
        %v698 = vadd.f32 %v697, 1.0
        %v699 = vmul.f32 %v691, %v698
        %v700 = vpack.c.bf16 %v699, %v699
        %v701 = vld [vmem:[%s6] sm:$0x7]
        %v702 = vld [vmem:[%s5] sm:$0xf]
        %v703 = vld [vmem:[%s5 + $0x4] sm:$0xf]
        %v704 = vld [vmem:[%s5 + $0x8] sm:$0xf]
        %v705 = vld [vmem:[%s5 + $0xc] sm:$0xf]
        %v706 = vlaneseq
        %v707 = vshrl.u32 %v706, 7
        %v708 = vsub.s32 0, %v707
        %v709 = vrot.slane %v701, %v708
        %v714 = vunpack.c.l.b16 %v702
        %v715 = vunpack.c.l.b16 %v703
        %v716 = vunpack.c.l.b16 %v704
        %v717 = vunpack.c.l.b16 %v705
        %v718 = vpack.c.b16 %v715, %v714
        %v719 = vpack.c.b16 %v717, %v716
        %v723 = vsel %vm522, %v700, 0
        %725 = vmatprep.subr.bf16.mxu0 0
        %726 = vmatpush1.bf16.msra.mxu0 %v718
        %727 = vmatprep.subr.bf16.mxu0 0
        %728 = vmatpush1.bf16.msra.mxu0 %v719
        %729 = vmatprep.subr.bf16.mxu0 0
        %730 = vmatpush1.bf16.msra.mxu0 0
        %731 = vmatprep.subr.bf16.mxu0 0
        %732 = vmatpush1.bf16.msra.mxu0 0
        %733 = vmatprep.subr.bf16.mxu0 0
        %734 = vmatpush1.bf16.msra.mxu0 0
        %735 = vmatprep.subr.bf16.mxu0 0
        %736 = vmatpush1.bf16.msra.mxu0 0
        %737 = vmatprep.subr.bf16.mxu0 0
        %738 = vmatpush1.bf16.msra.mxu0 0
        %739 = vmatprep.subr.bf16.mxu0 0
        %740 = vmatpush1.bf16.msra.mxu0 0
        %741 = vmatprep.subr.bf16.mxu0 0
        %742 = vmatpush1.bf16.msra.mxu0 0
        %743 = vmatprep.subr.bf16.mxu0 0
        %744 = vmatpush1.bf16.msra.mxu0 0
        %745 = vmatprep.subr.bf16.mxu0 0
        %746 = vmatpush1.bf16.msra.mxu0 0
        %747 = vmatprep.subr.bf16.mxu0 0
        %748 = vmatpush1.bf16.msra.mxu0 0
        %749 = vmatprep.subr.bf16.mxu0 0
        %750 = vmatpush1.bf16.msra.mxu0 0
        %751 = vmatprep.subr.bf16.mxu0 0
        %752 = vmatpush1.bf16.msra.mxu0 0
        %753 = vmatprep.subr.bf16.mxu0 0
        %754 = vmatpush1.bf16.msra.mxu0 0
        %755 = vmatprep.subr.bf16.mxu0 0
        %756 = vmatpush1.bf16.msra.mxu0 0
        %757 = vmatprep.mubr.bf16.mxu0 0
        %758 = vmatmul.mubr.bf16.gmra.mrb[0].mxu0 %v723
        %v759 = vpop.f32.mrb[0].mxu0
        %v760 = vadd.f32 %v709, %v759
        %v761 = vpop.f32.mrb[0].mxu0
        %v762 = vpop.f32.mrb[0].mxu0
        %v763 = vpop.f32.mrb[0].mxu0
        %764 = vdwg.mxu0
        %vm765 = vcmask 523264
        %v766 = vsel %vm765, %v760, 0.0
        %767 = vadd.xlane.f32.xlu0 %v766
        %v768 = vpop.xlane.xlu0 %767
        %v769 = vrcp.pop 64.0
        %v770 = vmul.f32 %v768, %v769
        %v771 = vmul.f32 %v760, %v760
        %v772 = vsel %vm765, %v771, 0.0
        %773 = vadd.xlane.f32.xlu0 %v772
        %v774 = vpop.xlane.xlu0 %773
        %v775 = vmul.f32 %v774, %v769
        %v776 = vmul.f32 %v770, %v770
        %v777 = vsub.f32 %v775, %v776
        %v778 = vsub.f32 %v760, %v770
        %v779 = vadd.f32 %v777, 1e-05
        %v780 = vrsqrt.pop %v779
        %v781 = vmul.f32 %v778, %v780
        %v782 = vlaneseq
        %v783 = vshrl.u32 %v782, 7
        %v784 = vsub.s32 1, %v783
        %v785 = vrot.slane %v701, %v784
        %v786 = vmul.f32 %v781, %v785
        %v787 = vlaneseq
        %v788 = vshrl.u32 %v787, 7
        %v789 = vsub.s32 2, %v788
        %v790 = vrot.slane %v701, %v789
        %v791 = vadd.f32 %v786, %v790
        %v792 = vmul.f32 %v791, 0.5
        %v793 = vmul.f32 %v791, 0.044715
        %v794 = vmul.f32 %v793, %v791
        %v795 = vmul.f32 %v794, %v791
        %v796 = vadd.f32 %v791, %v795
        %v797 = vmul.f32 %v796, 0.7978846
        %v798 = vtanh.pop %v797
        %v799 = vadd.f32 %v798, 1.0
        %v800 = vmul.f32 %v792, %v799
        %v801 = vpack.c.bf16 %v800, %v800
        %v802 = vld [vmem:[%s8] sm:$0x3]
        %v803 = vld [vmem:[#allocation14] sm:$0xf]
        %v804 = vld [vmem:[#allocation14 + $0x4] sm:$0xf]
        %v805 = vld [vmem:[#allocation14 + $0x8] sm:$0xf]
        %v806 = vld [vmem:[#allocation14 + $0xc] sm:$0xf]
        %v807 = vlaneseq
        %v808 = vshrl.u32 %v807, 7
        %v809 = vsub.s32 0, %v808
        %v810 = vrot.slane %v802, %v809
        %v815 = vunpack.c.l.b16 %v803
        %v816 = vunpack.c.l.b16 %v804
        %v817 = vunpack.c.l.b16 %v805
        %v818 = vunpack.c.l.b16 %v806
        %v819 = vpack.c.b16 %v816, %v815
        %v820 = vpack.c.b16 %v818, %v817
        %v824 = vsel %vm522, %v801, 0
        %826 = vmatprep.subr.bf16.mxu0 0
        %827 = vmatpush1.bf16.msra.mxu0 %v819
        %828 = vmatprep.subr.bf16.mxu0 0
        %829 = vmatpush1.bf16.msra.mxu0 %v820
        %830 = vmatprep.subr.bf16.mxu0 0
        %831 = vmatpush1.bf16.msra.mxu0 0
        %832 = vmatprep.subr.bf16.mxu0 0
        %833 = vmatpush1.bf16.msra.mxu0 0
        %834 = vmatprep.subr.bf16.mxu0 0
        %835 = vmatpush1.bf16.msra.mxu0 0
        %836 = vmatprep.subr.bf16.mxu0 0
        %837 = vmatpush1.bf16.msra.mxu0 0
        %838 = vmatprep.subr.bf16.mxu0 0
        %839 = vmatpush1.bf16.msra.mxu0 0
        %840 = vmatprep.subr.bf16.mxu0 0
        %841 = vmatpush1.bf16.msra.mxu0 0
        %842 = vmatprep.subr.bf16.mxu0 0
        %843 = vmatpush1.bf16.msra.mxu0 0
        %844 = vmatprep.subr.bf16.mxu0 0
        %845 = vmatpush1.bf16.msra.mxu0 0
        %846 = vmatprep.subr.bf16.mxu0 0
        %847 = vmatpush1.bf16.msra.mxu0 0
        %848 = vmatprep.subr.bf16.mxu0 0
        %849 = vmatpush1.bf16.msra.mxu0 0
        %850 = vmatprep.subr.bf16.mxu0 0
        %851 = vmatpush1.bf16.msra.mxu0 0
        %852 = vmatprep.subr.bf16.mxu0 0
        %853 = vmatpush1.bf16.msra.mxu0 0
        %854 = vmatprep.subr.bf16.mxu0 0
        %855 = vmatpush1.bf16.msra.mxu0 0
        %856 = vmatprep.subr.bf16.mxu0 0
        %857 = vmatpush1.bf16.msra.mxu0 0
        %858 = vmatprep.mubr.bf16.mxu0 0
        %859 = vmatmul.mubr.bf16.gmra.mrb[0].mxu0 %v824
        %v860 = vpop.f32.mrb[0].mxu0
        %v861 = vadd.f32 %v810, %v860
        %v862 = vpop.f32.mrb[0].mxu0
        %v863 = vpop.f32.mrb[0].mxu0
        %v864 = vpop.f32.mrb[0].mxu0
        %865 = vdwg.mxu0
        %v866 = vtanh.pop %v861
        %v867 = vmul.f32 %v861, 0.5
        %v868 = vtanh.pop %v867
        %v869 = vadd.f32 %v868, 1.0
        %v870 = vmul.f32 %v869, 0.5
        %872 = vrot.lane.b32.xlu0 %v870, 112
        %v873 = vpop.permute.xlu0 %872
        %v875 = vmul.f32 %v866, %v873
        %v876 = vlaneseq
        %v877 = vshrl.u32 %v876, 7
        %v878 = vsub.s32 1, %v877
        %v879 = vrot.slane %v802, %v878
        %v880 = vmul.f32 %v875, %v879
        %vm881 = vcmask 130048
        %v882 = vsel %vm881, %v880, 0.0
        %883 = vadd.xlane.f32.xlu0 %v882
        %v884 = vpop.xlane.xlu0 %883
        %s885 = scalar_lea.vmem %s8, 2
        %v886 = vld [vmem:[%s885] sm:$0x3]
        %s887 = scalar_lea.vmem [#allocation14], 16
        %v888 = vld [vmem:[%s887] sm:$0xf]
        %v889 = vld [vmem:[%s887 + $0x4] sm:$0xf]
        %v890 = vld [vmem:[%s887 + $0x8] sm:$0xf]
        %v891 = vld [vmem:[%s887 + $0xc] sm:$0xf]
        %v892 = vlaneseq
        %v893 = vshrl.u32 %v892, 7
        %v894 = vsub.s32 0, %v893
        %v895 = vrot.slane %v886, %v894
        %897 = vrot.lane.b32.xlu0 %v801, 96
        %v898 = vpop.permute.xlu0 %897
        %v903 = vunpack.c.l.b16 %v888
        %v904 = vunpack.c.l.b16 %v889
        %v905 = vunpack.c.l.b16 %v890
        %v906 = vunpack.c.l.b16 %v891
        %v907 = vpack.c.b16 %v904, %v903
        %v908 = vpack.c.b16 %v906, %v905
        %v912 = vsel %vm522, %v898, 0
        %914 = vmatprep.subr.bf16.mxu0 0
        %915 = vmatpush1.bf16.msra.mxu0 %v907
        %916 = vmatprep.subr.bf16.mxu0 0
        %917 = vmatpush1.bf16.msra.mxu0 %v908
        %918 = vmatprep.subr.bf16.mxu0 0
        %919 = vmatpush1.bf16.msra.mxu0 0
        %920 = vmatprep.subr.bf16.mxu0 0
        %921 = vmatpush1.bf16.msra.mxu0 0
        %922 = vmatprep.subr.bf16.mxu0 0
        %923 = vmatpush1.bf16.msra.mxu0 0
        %924 = vmatprep.subr.bf16.mxu0 0
        %925 = vmatpush1.bf16.msra.mxu0 0
        %926 = vmatprep.subr.bf16.mxu0 0
        %927 = vmatpush1.bf16.msra.mxu0 0
        %928 = vmatprep.subr.bf16.mxu0 0
        %929 = vmatpush1.bf16.msra.mxu0 0
        %930 = vmatprep.subr.bf16.mxu0 0
        %931 = vmatpush1.bf16.msra.mxu0 0
        %932 = vmatprep.subr.bf16.mxu0 0
        %933 = vmatpush1.bf16.msra.mxu0 0
        %934 = vmatprep.subr.bf16.mxu0 0
        %935 = vmatpush1.bf16.msra.mxu0 0
        %936 = vmatprep.subr.bf16.mxu0 0
        %937 = vmatpush1.bf16.msra.mxu0 0
        %938 = vmatprep.subr.bf16.mxu0 0
        %939 = vmatpush1.bf16.msra.mxu0 0
        %940 = vmatprep.subr.bf16.mxu0 0
        %941 = vmatpush1.bf16.msra.mxu0 0
        %942 = vmatprep.subr.bf16.mxu0 0
        %943 = vmatpush1.bf16.msra.mxu0 0
        %944 = vmatprep.subr.bf16.mxu0 0
        %945 = vmatpush1.bf16.msra.mxu0 0
        %946 = vmatprep.mubr.bf16.mxu0 0
        %947 = vmatmul.mubr.bf16.gmra.mrb[0].mxu0 %v912
        %v948 = vpop.f32.mrb[0].mxu0
        %v949 = vadd.f32 %v895, %v948
        %v950 = vpop.f32.mrb[0].mxu0
        %v951 = vpop.f32.mrb[0].mxu0
        %v952 = vpop.f32.mrb[0].mxu0
        %953 = vdwg.mxu0
        %v954 = vtanh.pop %v949
        %v955 = vmul.f32 %v949, 0.5
        %v956 = vtanh.pop %v955
        %v957 = vadd.f32 %v956, 1.0
        %v958 = vmul.f32 %v957, 0.5
        %960 = vrot.lane.b32.xlu0 %v958, 112
        %v961 = vpop.permute.xlu0 %960
        %v963 = vmul.f32 %v954, %v961
        %v964 = vlaneseq
        %v965 = vshrl.u32 %v964, 7
        %v966 = vsub.s32 1, %v965
        %v967 = vrot.slane %v886, %v966
        %v968 = vmul.f32 %v963, %v967
        %v969 = vsel %vm881, %v968, 0.0
        %970 = vadd.xlane.f32.xlu0 %v969
        %v971 = vpop.xlane.xlu0 %970
        %vm972 = vcmask 7168
        %v973 = vsel %vm972, %v884, %v971
        %v974 = vlaneseq
        %v975 = vshrl.u32 %v974, 7
        %s976 = smul.u32 %s40, 2
        %s977 = sadd.s32 %s976, %s41
        %s978 = smul.u32 %s977, 8
        %v979 = vstv %s978
        %v980 = vadd.s32 %v979, %v975
        %vm981 = vcmp.lt.s32.totalorder %v980, 20
        %v982 = vsel %vm981, 1, 0
        %vm983 = vcmp.eq.s32.totalorder %v982, 1
        %v984 = vsel %vm983, %v973, -inf
        %v985 = vld [vmem:[#allocation2] sm:$0x1]
        %vm986 = vcmask 15360
        %v987 = vsel %vm986, %v984, -inf
        %v988 = vrot.slane %v987, 4
        %v989 = vmax.f32 %v987, %v988
        %v990 = vrot.slane %v989, 2
        %v991 = vmax.f32 %v989, %v990
        %v992 = vrot.slane %v991, 1
        %v993 = vmax.f32 %v991, %v992
        %v994 = vmax.f32 %v985, %v993
        %v995 = vsub.f32 %v985, %v994
        %v996 = vmul.f32 %v995, 1.442695
        %v997 = vpow.pop %v996
        %v999 = vlaneseq
        %v1000 = vshrl.u32 %v999, 7
        %v1001 = vsub.s32 0, %v1000
        %v1002 = vrot.slane %v994, %v1001
        %v1004 = vsub.f32 %v984, %v1002
        %v1005 = vmul.f32 %v1004, 1.442695
        %v1006 = vpow.pop %v1005
        %v1007 = vld [vmem:[#allocation3] sm:$0x1]
        %v1008 = vmul.f32 %v997, %v1007
        %v1009 = vsel %vm986, %v1006, 0.0
        %v1010 = vrot.slane %v1009, 4
        %v1011 = vadd.f32 %v1009, %v1010
        %v1012 = vrot.slane %v1011, 2
        %v1013 = vadd.f32 %v1011, %v1012
        %v1014 = vrot.slane %v1013, 1
        %v1015 = vadd.f32 %v1013, %v1014
        %v1016 = vadd.f32 %v1008, %v1015
        %vm1017 = vcmask 8192
        %1018 = vst.msk [vmem:[#allocation3] sm:$0x1] %vm1017, %v1016
        %1019 = vst.msk [vmem:[#allocation2] sm:$0x1] %vm1017, %v994
        %v1020 = vunpack.c.l.bf16 %v801
        %1022 = vset.pattern.permute.xlu0 0
        %1023 = vperm.xlu0 %1022, %v1006
        %v1024 = vpop.permute.xlu0 %1023
        %v1026 = vmul.f32 %v1020, %v1024
        %v1027 = vsel %vm522, %v1026, 0.0
        %v1028 = vrot.slane %v1027, 4
        %v1029 = vadd.f32 %v1027, %v1028
        %v1030 = vrot.slane %v1029, 2
        %v1031 = vadd.f32 %v1029, %v1030
        %v1032 = vrot.slane %v1031, 1
        %v1033 = vadd.f32 %v1031, %v1032
        %v1034 = vld [vmem:[#allocation4] sm:$0x1]
        %1036 = vset.pattern.permute.xlu0 0
        %1037 = vperm.xlu0 %1036, %v997
        %v1038 = vpop.permute.xlu0 %1037
        %v1040 = vlaneseq
        %v1041 = vshrl.u32 %v1040, 7
        %v1042 = vsub.s32 0, %v1041
        %v1043 = vrot.slane %v1038, %v1042
        %v1044 = vmul.f32 %v1043, %v1034
        %v1045 = vadd.f32 %v1044, %v1033
        %vm1046 = vcmask 253952
        %1047 = vst.msk [vmem:[#allocation4] sm:$0x1] %vm1046, %v1045
        %1048 = vset.pattern.permute.xlu0 1
        %1049 = vperm.xlu0 %1048, %v1006
        %v1050 = vpop.permute.xlu0 %1049
        %v1052 = vmul.f32 %v1020, %v1050
        %vm1053 = vcmask 523520
        %v1054 = vsel %vm1053, %v1052, 0.0
        %v1055 = vrot.slane %v1054, 4
        %v1056 = vadd.f32 %v1054, %v1055
        %v1057 = vrot.slane %v1056, 2
        %v1058 = vadd.f32 %v1056, %v1057
        %v1059 = vrot.slane %v1058, 1
        %v1060 = vadd.f32 %v1058, %v1059
        %v1061 = vld [vmem:[#allocation4 + $0x1] sm:$0x1]
        %1062 = vset.pattern.permute.xlu0 1
        %1063 = vperm.xlu0 %1062, %v997
        %v1064 = vpop.permute.xlu0 %1063
        %v1066 = vlaneseq
        %v1067 = vshrl.u32 %v1066, 7
        %v1068 = vsub.s32 0, %v1067
        %v1069 = vrot.slane %v1064, %v1068
        %v1070 = vmul.f32 %v1069, %v1061
        %1072 = vrot.lane.b32.xlu0 %v1060, 96
        %v1073 = vpop.permute.xlu0 %1072
        %v1075 = vadd.f32 %v1070, %v1073
        %1076 = vst.msk [vmem:[#allocation4 + $0x1] sm:$0x1] %vm1046, %v1075
        %p1077 = scmp.eq.s32.totalorder %s41, 1
        // Predicated region
        $region85: #{tpu_custom_call.1} parent=55 // pred_check
          %p1078 = pneg %p1077
        $region86: #{tpu_custom_call.1} parent=55 // pred_check_branch
          %1080 = sbr.rel (%p1078) target = $region88
        $region87: #{tpu_custom_call.1} parent=55 // pred_region
          %v1081 = vld [vmem:[#allocation4] sm:$0x3]
          %vm1082 = vcmask 254976
          %1083 = vst.msk [vmem:[%s480] sm:$0x3] %vm1082, %v1081
          %v1084 = vld [vmem:[#allocation2] sm:$0x1]
          %1085 = vst.msk [vmem:[%s487] sm:$0x1] %vm1017, %v1084
          %v1086 = vld [vmem:[#allocation3] sm:$0x1]
          %1087 = vst.msk [vmem:[%s487 + $0x1] sm:$0x1] %vm1017, %v1086
        $region88: #{tpu_custom_call.1} parent=55 // pred_fallthru
          _
        %s1088 = sand.u32 %s263, 1
        %s1089 = scalar_lea.sflag [#allocation7], %s1088
        %s1090 = sand.u32 %s263, 1
        %s1091 = smul.addr %s1090, 2
        %s1092 = scalar_lea.vmem [#allocation16], %s1091
        %s1093 = sand.u32 %s291, 1
        %s1094 = scalar_lea.sflag [#allocation18], %s1093
        %s1095 = sand.u32 %s291, 1
        %s1096 = smul.addr %s1095, 2
        %s1097 = scalar_lea.vmem [#allocation17], %s1096
        // Predicated region
        $region89: #{tpu_custom_call.1} parent=55 // pred_check
          %p1098 = pneg %p273
        $region90: #{tpu_custom_call.1} parent=55 // pred_check_branch
          %1100 = sbr.rel (%p1098) target = $region92
        $region91: #{tpu_custom_call.1} parent=55 // pred_region
          %s1102 = ssub.s32 32, 32
          %1103 = vsyncadd %s1089, %s1102
          %s1104 = smul.addr %s39, 2
          %s1105 = sadd.s32 %s40, %s1104
          %s1106 = smul.addr %s1105, 32
          %s1107 = scalar_lea.hbm %s9, %s1106
          %s1109 = sshll.u32 %s1092, 4
          %s1110 = int_to_ptr.vmem [resolvable:$true] %s1109
          %1112 = dma.vmem_to_hbm [thread:$0]  %s1110, 32, %s1107, %s1089
        $region92: #{tpu_custom_call.1} parent=55 // pred_fallthru
          _
        // Predicated region
        $region93: #{tpu_custom_call.1} parent=55 // pred_check
          %p1113 = pneg %p301
        $region94: #{tpu_custom_call.1} parent=55 // pred_check_branch
          %1115 = sbr.rel (%p1113) target = $region96
        $region95: #{tpu_custom_call.1} parent=55 // pred_region
          %s1117 = ssub.s32 32, 32
          %1118 = vsyncadd %s1094, %s1117
          %s1119 = smul.addr %s39, 2
          %s1120 = sadd.s32 %s40, %s1119
          %s1121 = smul.addr %s1120, 32
          %s1122 = scalar_lea.hbm %s10, %s1121
          %s1124 = sshll.u32 %s1097, 4
          %s1125 = int_to_ptr.vmem [resolvable:$true] %s1124
          %1127 = dma.vmem_to_hbm [thread:$0]  %s1125, 32, %s1122, %s1094
        $region96: #{tpu_custom_call.1} parent=55 // pred_fallthru
          _
      $region56: #{tpu_custom_call.1} parent=5 // pred_fallthru
        _
      %p1128 = scmp.le.s32.totalorder 2, %s29
      // Predicated region
      $region97: #{tpu_custom_call.1} parent=5 // pred_check
        %p1129 = pneg %p1128
      $region98: #{tpu_custom_call.1} parent=5 // pred_check_branch
        %1131 = sbr.rel (%p1129) target = $region100
      $region99: #{tpu_custom_call.1} parent=5 // pred_region
        %s1132 = ssub.s32 %s29, 2
        // Predicated region
        $region101: #{tpu_custom_call.1} parent=99 // pred_check
          %p1133 = pneg %p279
        $region102: #{tpu_custom_call.1} parent=99 // pred_check_branch
          %1135 = sbr.rel (%p1133) target = $region104
        $region103: #{tpu_custom_call.1} parent=99 // pred_region
          %s1136 = sand.u32 %s264, 1
          %s1137 = scalar_lea.sflag [#allocation7], %s1136
          %s1138 = sand.u32 %s264, 1
          %s1139 = smul.addr %s1138, 2
          %s1140 = scalar_lea.vmem [#allocation16], %s1139
          %1141 = dma.done %s1137, 32
        $region104: #{tpu_custom_call.1} parent=99 // pred_fallthru
          _
        // Predicated region
        $region105: #{tpu_custom_call.1} parent=99 // pred_check
          %p1142 = pneg %p307
        $region106: #{tpu_custom_call.1} parent=99 // pred_check_branch
          %1144 = sbr.rel (%p1142) target = $region108
        $region107: #{tpu_custom_call.1} parent=99 // pred_region
          %s1145 = sand.u32 %s292, 1
          %s1146 = scalar_lea.sflag [#allocation18], %s1145
          %s1147 = sand.u32 %s292, 1
          %s1148 = smul.addr %s1147, 2
          %s1149 = scalar_lea.vmem [#allocation17], %s1148
          %1150 = dma.done %s1146, 32
        $region108: #{tpu_custom_call.1} parent=99 // pred_fallthru
          _
      $region100: #{tpu_custom_call.1} parent=5 // pred_fallthru
        _
    $region6: #{tpu_custom_call.1} parent=1 // loop_footer
      %s33 = sadd.s32 1, %s29
    $region7: #{tpu_custom_call.1} parent=1 // loop_footer_branch
      %28 = sbr.rel target = $region3
    $region8: #{tpu_custom_call.1} parent=1 // loop_exit
      _
    %1151 = vsyncpa [#allocation6], 1
    %s1152 = scalar_lea.sflag [#allocation6], 1
    %1153 = vsyncpa %s1152, 1
    %1154 = vsyncpa [#allocation9], 1
    %1155 = vsyncpa [#allocation12], 1
    %1156 = vsyncpa [#allocation15], 1
    %1157 = vsyncpa [#allocation7], 1
    %s1158 = scalar_lea.sflag [#allocation7], 1
    %1159 = vsyncpa %s1158, 1
    %1160 = vsyncpa [#allocation18], 1
    %s1161 = scalar_lea.sflag [#allocation18], 1
    %1162 = vsyncpa %s1161, 1

</llo_original>
